<compile_context>
chip_gen: v6e
topology: v6e:2x2x1
jax: 0.10.0
libtpu: 0.0.40
codegen_flags: <defaults>
</compile_context>

<pallas_src>
import numpy as np
import jax
import jax.numpy as jnp
from jax.experimental import pallas as pl
from jax.experimental.pallas import tpu as pltpu

INPUT_DIMS = (1, 28, 28)
HIDDEN_LAYERS = [512, 256, 128]
NUM_CLASSES = 10

IN_DIM = int(np.prod(INPUT_DIMS))          # 784 (full-array K dim; Mosaic pads internally)
OUT_PAD = 128                              # lane-dense output slab (sliced to 10)
MAX_TB = 1024                              # batch tile (sweepable: 512 / 1024 / 2048)


def mlp_kernel(x_ref, w1_ref, b1_ref, w2_ref, b2_ref, w3_ref, b3_ref,
               w4_ref, b4_ref, o_ref):
    """Fused MLP: (Linear + ReLU) x 3 -> Linear on one batch tile.

    x arrives f32 and is cast to bf16 in-kernel; weights are bf16 (MXU-native);
    accumulation, bias-add and ReLU stay f32 (v5e has no bf16 VPU/EUP).
    """
    x = x_ref[...].astype(jnp.bfloat16)

    h = jnp.dot(x, w1_ref[...], preferred_element_type=jnp.float32)
    h = jnp.maximum(h + b1_ref[...], 0.0)

    h = jnp.dot(h.astype(jnp.bfloat16), w2_ref[...],
                preferred_element_type=jnp.float32)
    h = jnp.maximum(h + b2_ref[...], 0.0)

    h = jnp.dot(h.astype(jnp.bfloat16), w3_ref[...],
                preferred_element_type=jnp.float32)
    h = jnp.maximum(h + b3_ref[...], 0.0)

    h = jnp.dot(h.astype(jnp.bfloat16), w4_ref[...],
                preferred_element_type=jnp.float32)
    o_ref[...] = (h + b4_ref[...]).astype(o_ref.dtype)   # bf16 lane-dense store


def prepare_params(params):
    """One-time weight prep (do NOT re-run per forward call).

    Pads the class dim 10 -> 128 with zeros (w4 cols, b4 cols) for lane-dense
    output stores and casts all weights to bf16. Biases stay f32.
    """
    (w1, b1), (w2, b2), (w3, b3), (w4, b4) = params
    w4 = jnp.pad(w4, ((0, 0), (0, OUT_PAD - NUM_CLASSES)))
    b4 = jnp.pad(b4, ((0, 0), (0, OUT_PAD - NUM_CLASSES)))
    w1, w2, w3, w4 = (w.astype(jnp.bfloat16) for w in (w1, w2, w3, w4))
    return (w1, b1, w2, b2, w3, b3, w4, b4)


def mlp_forward(x_nchw, prepped):
    """x_nchw: (B, 1, 28, 28) float32. prepped: output of prepare_params()."""
    B = x_nchw.shape[0]
    x = x_nchw.reshape(B, IN_DIM)  # torch.flatten(x, 1) semantics (row-major)

    w1, b1, w2, b2, w3, b3, w4, b4 = prepped

    # --- batch tiling --------------------------------------------------------
    if B > MAX_TB:
        tb = MAX_TB
    else:
        # Aim for >=2 grid steps (feeds both v7x TensorCores over the
        # "parallel" axis) while keeping tiles >= 16 rows (bf16 sublane tile).
        tb = max(16, int(pl.next_power_of_2(pl.cdiv(B, 2))))
    n_blocks = pl.cdiv(B, tb)
    b_pad = n_blocks * tb
    if b_pad != B:
        x = jnp.pad(x, ((0, b_pad - B), (0, 0)))

    h1, h2, h3 = HIDDEN_LAYERS
    resident = pl.Buffered(1)   # weights/biases: constant index_map, single buffer

    in_specs = [
        # x: tiled over batch, full-dim K block (784 == full array dim is legal),
        # default double-buffering on the activation stream.
        pl.BlockSpec((tb, IN_DIM), lambda i: (i, 0)),
        pl.BlockSpec((IN_DIM, h1), lambda i: (0, 0), pipeline_mode=resident),   # w1
        pl.BlockSpec((1, h1), lambda i: (0, 0), pipeline_mode=resident),        # b1
        pl.BlockSpec((h1, h2), lambda i: (0, 0), pipeline_mode=resident),       # w2
        pl.BlockSpec((1, h2), lambda i: (0, 0), pipeline_mode=resident),        # b2
        pl.BlockSpec((h2, h3), lambda i: (0, 0), pipeline_mode=resident),       # w3
        pl.BlockSpec((1, h3), lambda i: (0, 0), pipeline_mode=resident),        # b3
        pl.BlockSpec((h3, OUT_PAD), lambda i: (0, 0), pipeline_mode=resident),  # w4
        pl.BlockSpec((1, OUT_PAD), lambda i: (0, 0), pipeline_mode=resident),   # b4
    ]
    out_spec = pl.BlockSpec((tb, OUT_PAD), lambda i: (i, 0))
    out_shape = jax.ShapeDtypeStruct((b_pad, OUT_PAD), jnp.bfloat16)

    # Advisory cost estimate for XLA scheduling around the custom call.
    flops = 2 * b_pad * (IN_DIM * h1 + h1 * h2 + h2 * h3 + h3 * OUT_PAD)
    weight_bytes = (2 * (IN_DIM * h1 + h1 * h2 + h2 * h3 + h3 * OUT_PAD)
                    + 4 * (h1 + h2 + h3 + OUT_PAD))
    bytes_accessed = weight_bytes + b_pad * (4 * IN_DIM + 2 * OUT_PAD)

    out = pl.pallas_call(
        mlp_kernel,
        out_shape=out_shape,
        grid=(n_blocks,),
        in_specs=in_specs,
        out_specs=out_spec,
        compiler_params=pltpu.CompilerParams(
            dimension_semantics=("parallel",),
            vmem_limit_bytes=32 << 20,
        ),
        cost_estimate=pl.CostEstimate(
            flops=flops, transcendentals=0, bytes_accessed=bytes_accessed),
    )(x, w1, b1, w2, b2, w3, b3, w4, b4)

    return out[:B, :NUM_CLASSES].astype(jnp.float32)


def init_params(key):
    """Deterministic PyTorch-style Linear init: U(-1/sqrt(fan_in), 1/sqrt(fan_in))."""
    dims = [IN_DIM] + HIDDEN_LAYERS + [NUM_CLASSES]
    params = []
    for i in range(len(dims) - 1):
        fan_in, fan_out = dims[i], dims[i + 1]
        key, kw, kb = jax.random.split(key, 3)
        bound = 1.0 / np.sqrt(fan_in)
        w = jax.random.uniform(kw, (fan_in, fan_out), jnp.float32, -bound, bound)
        b = jax.random.uniform(kb, (1, fan_out), jnp.float32, -bound, bound)
        params.append((w, b))
    return params


def reference_forward(x_nchw, params):
    """Pure-JAX f32 reference for sanity checking."""
    B = x_nchw.shape[0]
    x = x_nchw.reshape(B, -1)
    for i, (w, b) in enumerate(params):
        x = x @ w + b
        if i < len(params) - 1:
            x = jnp.maximum(x, 0.0)
    return x


if __name__ == "__main__":
    key = jax.random.PRNGKey(0)
    key, kx = jax.random.split(key)

    B = 2
    x = jax.random.normal(kx, (B,) + INPUT_DIMS, dtype=jnp.float32)

    params = init_params(key)
    prepped = prepare_params(params)            # one-time weight prep (static)
    prepped = jax.block_until_ready(prepped)

    out = mlp_forward(x, prepped)
    out = jax.block_until_ready(out)

    ref = reference_forward(x, params)
    # bf16 matmul inputs + bf16 output store -> loosen tolerance vs f32 reference.
    np.testing.assert_allclose(np.asarray(out), np.asarray(ref),
                               rtol=2e-2, atol=2e-2)

    assert out.shape == (B, NUM_CLASSES)
    print("KERNEL_OK")
</pallas_src>

<mosaic_0001>
module attributes {stable_mosaic.version = 11 : i64} {
  func.func @mlp_kernel(%arg0: i32, %arg1: memref<16x784xf32, #tpu.memory_space<vmem>>, %arg2: memref<784x512xbf16, #tpu.memory_space<vmem>>, %arg3: memref<1x512xf32, #tpu.memory_space<vmem>>, %arg4: memref<512x256xbf16, #tpu.memory_space<vmem>>, %arg5: memref<1x256xf32, #tpu.memory_space<vmem>>, %arg6: memref<256x128xbf16, #tpu.memory_space<vmem>>, %arg7: memref<1x128xf32, #tpu.memory_space<vmem>>, %arg8: memref<128x128xbf16, #tpu.memory_space<vmem>>, %arg9: memref<1x128xf32, #tpu.memory_space<vmem>>, %arg10: memref<16x128xbf16, #tpu.memory_space<vmem>>) attributes {dimension_semantics = [#tpu.dimension_semantics<parallel>], iteration_bounds = array<i64: 1>, scalar_prefetch = 0 : i64, scratch_operands = 0 : i64, tpu.core_type = #tpu.core_type<tc>, window_params = [{transform_indices = @transform_0, window_bounds = array<i64: 16, 784>}, {pipeline_mode = #tpu.pipeline_mode<synchronous>, transform_indices = @transform_1, window_bounds = array<i64: 784, 512>}, {pipeline_mode = #tpu.pipeline_mode<synchronous>, transform_indices = @transform_2, window_bounds = array<i64: 1, 512>}, {pipeline_mode = #tpu.pipeline_mode<synchronous>, transform_indices = @transform_3, window_bounds = array<i64: 512, 256>}, {pipeline_mode = #tpu.pipeline_mode<synchronous>, transform_indices = @transform_4, window_bounds = array<i64: 1, 256>}, {pipeline_mode = #tpu.pipeline_mode<synchronous>, transform_indices = @transform_5, window_bounds = array<i64: 256, 128>}, {pipeline_mode = #tpu.pipeline_mode<synchronous>, transform_indices = @transform_6, window_bounds = array<i64: 1, 128>}, {pipeline_mode = #tpu.pipeline_mode<synchronous>, transform_indices = @transform_7, window_bounds = array<i64: 128, 128>}, {pipeline_mode = #tpu.pipeline_mode<synchronous>, transform_indices = @transform_8, window_bounds = array<i64: 1, 128>}, {transform_indices = @transform_9, window_bounds = array<i64: 16, 128>}]} {
    %c0 = arith.constant 0 : index
    %c0_0 = arith.constant 0 : index
    %0 = vector.load %arg1[%c0, %c0_0] : memref<16x784xf32, #tpu.memory_space<vmem>>, vector<16x784xf32>
    %1 = arith.truncf %0 : vector<16x784xf32> to vector<16x784xbf16>
    %c0_1 = arith.constant 0 : index
    %c0_2 = arith.constant 0 : index
    %2 = vector.load %arg2[%c0_1, %c0_2] : memref<784x512xbf16, #tpu.memory_space<vmem>>, vector<784x512xbf16>
    %cst = arith.constant dense<0.000000e+00> : vector<16x512xf32>
    %3 = tpu.matmul %1, %2, %cst {dimension_numbers = #tpu.dot_dimension_numbers<[1], [0], [0], [1], [0, 0, 1, 1], [], []>} : vector<16x784xbf16>, vector<784x512xbf16>, vector<16x512xf32> -> vector<16x512xf32>
    %c0_3 = arith.constant 0 : index
    %c0_4 = arith.constant 0 : index
    %4 = vector.load %arg3[%c0_3, %c0_4] : memref<1x512xf32, #tpu.memory_space<vmem>>, vector<1x512xf32>
    %5 = vector.broadcast %4 : vector<1x512xf32> to vector<16x512xf32>
    %6 = arith.addf %3, %5 : vector<16x512xf32>
    %cst_5 = arith.constant 0.000000e+00 : f32
    %7 = vector.broadcast %cst_5 : f32 to vector<16x512xf32>
    %8 = arith.maximumf %6, %7 : vector<16x512xf32>
    %9 = arith.truncf %8 : vector<16x512xf32> to vector<16x512xbf16>
    %c0_6 = arith.constant 0 : index
    %c0_7 = arith.constant 0 : index
    %10 = vector.load %arg4[%c0_6, %c0_7] : memref<512x256xbf16, #tpu.memory_space<vmem>>, vector<512x256xbf16>
    %cst_8 = arith.constant dense<0.000000e+00> : vector<16x256xf32>
    %11 = tpu.matmul %9, %10, %cst_8 {dimension_numbers = #tpu.dot_dimension_numbers<[1], [0], [0], [1], [0, 0, 1, 1], [], []>} : vector<16x512xbf16>, vector<512x256xbf16>, vector<16x256xf32> -> vector<16x256xf32>
    %c0_9 = arith.constant 0 : index
    %c0_10 = arith.constant 0 : index
    %12 = vector.load %arg5[%c0_9, %c0_10] : memref<1x256xf32, #tpu.memory_space<vmem>>, vector<1x256xf32>
    %13 = vector.broadcast %12 : vector<1x256xf32> to vector<16x256xf32>
    %14 = arith.addf %11, %13 : vector<16x256xf32>
    %cst_11 = arith.constant 0.000000e+00 : f32
    %15 = vector.broadcast %cst_11 : f32 to vector<16x256xf32>
    %16 = arith.maximumf %14, %15 : vector<16x256xf32>
    %17 = arith.truncf %16 : vector<16x256xf32> to vector<16x256xbf16>
    %c0_12 = arith.constant 0 : index
    %c0_13 = arith.constant 0 : index
    %18 = vector.load %arg6[%c0_12, %c0_13] : memref<256x128xbf16, #tpu.memory_space<vmem>>, vector<256x128xbf16>
    %cst_14 = arith.constant dense<0.000000e+00> : vector<16x128xf32>
    %19 = tpu.matmul %17, %18, %cst_14 {dimension_numbers = #tpu.dot_dimension_numbers<[1], [0], [0], [1], [0, 0, 1, 1], [], []>} : vector<16x256xbf16>, vector<256x128xbf16>, vector<16x128xf32> -> vector<16x128xf32>
    %c0_15 = arith.constant 0 : index
    %c0_16 = arith.constant 0 : index
    %20 = vector.load %arg7[%c0_15, %c0_16] : memref<1x128xf32, #tpu.memory_space<vmem>>, vector<1x128xf32>
    %21 = vector.broadcast %20 : vector<1x128xf32> to vector<16x128xf32>
    %22 = arith.addf %19, %21 : vector<16x128xf32>
    %cst_17 = arith.constant 0.000000e+00 : f32
    %23 = vector.broadcast %cst_17 : f32 to vector<16x128xf32>
    %24 = arith.maximumf %22, %23 : vector<16x128xf32>
    %25 = arith.truncf %24 : vector<16x128xf32> to vector<16x128xbf16>
    %c0_18 = arith.constant 0 : index
    %c0_19 = arith.constant 0 : index
    %26 = vector.load %arg8[%c0_18, %c0_19] : memref<128x128xbf16, #tpu.memory_space<vmem>>, vector<128x128xbf16>
    %cst_20 = arith.constant dense<0.000000e+00> : vector<16x128xf32>
    %27 = tpu.matmul %25, %26, %cst_20 {dimension_numbers = #tpu.dot_dimension_numbers<[1], [0], [0], [1], [0, 0, 1, 1], [], []>} : vector<16x128xbf16>, vector<128x128xbf16>, vector<16x128xf32> -> vector<16x128xf32>
    %c0_21 = arith.constant 0 : index
    %c0_22 = arith.constant 0 : index
    %28 = vector.load %arg9[%c0_21, %c0_22] : memref<1x128xf32, #tpu.memory_space<vmem>>, vector<1x128xf32>
    %29 = vector.broadcast %28 : vector<1x128xf32> to vector<16x128xf32>
    %30 = arith.addf %27, %29 : vector<16x128xf32>
    %31 = arith.truncf %30 : vector<16x128xf32> to vector<16x128xbf16>
    %c0_23 = arith.constant 0 : index
    %c0_24 = arith.constant 0 : index
    %32 = vector.load %arg10[%c0_23, %c0_24] : memref<16x128xbf16, #tpu.memory_space<vmem>>, vector<16x128xbf16>
    tpu.vector_store %arg10[%c0_23, %c0_24], %31 {strides = array<i32>} : memref<16x128xbf16, #tpu.memory_space<vmem>>, vector<16x128xbf16>,
    return
  }
  func.func @transform_0(%arg0: i32) -> (i32, i32) {
    %c0_i32 = arith.constant 0 : i32
    %c0_i32_0 = arith.constant 0 : i32
    return %arg0, %c0_i32 : i32, i32
  }
  func.func @transform_1(%arg0: i32) -> (i32, i32) {
    %c0_i32 = arith.constant 0 : i32
    %c0_i32_0 = arith.constant 0 : i32
    %c0_i32_1 = arith.constant 0 : i32
    return %c0_i32, %c0_i32_0 : i32, i32
  }
  func.func @transform_2(%arg0: i32) -> (i32, i32) {
    %c0_i32 = arith.constant 0 : i32
    %c0_i32_0 = arith.constant 0 : i32
    %c0_i32_1 = arith.constant 0 : i32
    return %c0_i32, %c0_i32_0 : i32, i32
  }
  func.func @transform_3(%arg0: i32) -> (i32, i32) {
    %c0_i32 = arith.constant 0 : i32
    %c0_i32_0 = arith.constant 0 : i32
    %c0_i32_1 = arith.constant 0 : i32
    return %c0_i32, %c0_i32_0 : i32, i32
  }
  func.func @transform_4(%arg0: i32) -> (i32, i32) {
    %c0_i32 = arith.constant 0 : i32
    %c0_i32_0 = arith.constant 0 : i32
    %c0_i32_1 = arith.constant 0 : i32
    return %c0_i32, %c0_i32_0 : i32, i32
  }
  func.func @transform_5(%arg0: i32) -> (i32, i32) {
    %c0_i32 = arith.constant 0 : i32
    %c0_i32_0 = arith.constant 0 : i32
    %c0_i32_1 = arith.constant 0 : i32
    return %c0_i32, %c0_i32_0 : i32, i32
  }
  func.func @transform_6(%arg0: i32) -> (i32, i32) {
    %c0_i32 = arith.constant 0 : i32
    %c0_i32_0 = arith.constant 0 : i32
    %c0_i32_1 = arith.constant 0 : i32
    return %c0_i32, %c0_i32_0 : i32, i32
  }
  func.func @transform_7(%arg0: i32) -> (i32, i32) {
    %c0_i32 = arith.constant 0 : i32
    %c0_i32_0 = arith.constant 0 : i32
    %c0_i32_1 = arith.constant 0 : i32
    return %c0_i32, %c0_i32_0 : i32, i32
  }
  func.func @transform_8(%arg0: i32) -> (i32, i32) {
    %c0_i32 = arith.constant 0 : i32
    %c0_i32_0 = arith.constant 0 : i32
    %c0_i32_1 = arith.constant 0 : i32
    return %c0_i32, %c0_i32_0 : i32, i32
  }
  func.func @transform_9(%arg0: i32) -> (i32, i32) {
    %c0_i32 = arith.constant 0 : i32
    %c0_i32_0 = arith.constant 0 : i32
    return %arg0, %c0_i32 : i32, i32
  }
}

</mosaic_0001>

<llo_original>
// kernel: tpu_custom_call.1
$region0: #{tpu_custom_call.1}
  #allocation0 [shape = 'u32[]', space=smem, size = 0x4, offset = 0x4, fixed_abs, tag = 'smem constant byte address 0x4 - core index']
  #allocation1 [shape = 'u32[144,128]{1,0:T(1,128)}', space=vmem, size = 0x12000, scoped, tag = 'internal scratch']
  %s0 = inlined_call_operand.hbm [shape: f32[16,784], index: 0, kind: input, shape index: {}]
  %s1 = inlined_call_operand.hbm [shape: bf16[784,512], index: 1, kind: input, shape index: {}]
  %s2 = inlined_call_operand.hbm [shape: f32[1,512], index: 2, kind: input, shape index: {}]
  %s3 = inlined_call_operand.hbm [shape: bf16[512,256], index: 3, kind: input, shape index: {}]
  %s4 = inlined_call_operand.vmem [shape: f32[1,256], index: 4, kind: input, shape index: {}]
  %s5 = inlined_call_operand.hbm [shape: bf16[256,128], index: 5, kind: input, shape index: {}]
  %s6 = inlined_call_operand.vmem [shape: f32[1,128], index: 6, kind: input, shape index: {}]
  %s7 = inlined_call_operand.hbm [shape: bf16[128,128], index: 7, kind: input, shape index: {}]
  %s8 = inlined_call_operand.vmem [shape: f32[1,128], index: 8, kind: input, shape index: {}]
  %s9 = inlined_call_operand.hbm [shape: bf16[16,128], index: 9, kind: output, shape index: {}]
  %s10 = sld [smem:[#allocation0]]
  $region70: #{tpu_custom_call.1} parent=0
    _
  %s12 = ssub.s32 1, %s10
  %s13 = scalar_select 0, %s12, %s10
  $region1: #{tpu_custom_call.1} parent=0
    #allocation2 [shape = 'u8[57344]{0}', space=vmem, size = 0xe000, scoped, tag = 'input window, operand 0, single buffered']
    #allocation3 [shape = 's32[1]{0}', space=sflag, size = 0x4, scoped, tag = 'scoped memory for tpu_custom_call.1']
    #allocation4 [shape = 's32[1]{0}', space=sflag, size = 0x4, scoped, tag = 'scoped memory for tpu_custom_call.1']
    #allocation5 [shape = 'u8[802816]{0}', space=vmem, size = 0xc4000, scoped, tag = 'input window, operand 1, single buffered']
    #allocation6 [shape = 's32[1]{0}', space=sflag, size = 0x4, scoped, tag = 'scoped memory for tpu_custom_call.1']
    #allocation7 [shape = 'u8[2048]{0}', space=vmem, size = 0x800, scoped, tag = 'input window, operand 2, single buffered']
    #allocation8 [shape = 'u8[262144]{0}', space=vmem, size = 0x40000, scoped, tag = 'input window, operand 3, single buffered']
    #allocation9 [shape = 's32[1]{0}', space=sflag, size = 0x4, scoped, tag = 'scoped memory for tpu_custom_call.1']
    #allocation10 [shape = 'u8[65536]{0}', space=vmem, size = 0x10000, scoped, tag = 'input window, operand 5, single buffered']
    #allocation11 [shape = 'u8[32768]{0}', space=vmem, size = 0x8000, scoped, tag = 'input window, operand 7, single buffered']
    #allocation12 [shape = 's32[1]{0}', space=sflag, size = 0x4, scoped, tag = 'scoped memory for tpu_custom_call.1']
    #allocation13 [shape = 'u8[4096]{0}', space=vmem, size = 0x1000, scoped, tag = 'output window, operand 0, single buffered']
    %14 = vsyncpa [#allocation3], 0
    %15 = vsyncpa [#allocation6], 0
    %16 = vsyncpa [#allocation9], 0
    %17 = vsyncpa [#allocation12], 0
    %18 = vsyncpa [#allocation4], 0
    // Predicated region
    $region2: #{tpu_custom_call.1} parent=1 // pred_check
      _
    $region3: #{tpu_custom_call.1} parent=1 // pred_check_branch
      %20 = sbr.rel (0) target = $region5
    $region4: #{tpu_custom_call.1} parent=1 // pred_region
      %s22 = ssub.s32 1792, 1792
      %23 = vsyncadd [#allocation3], %s22
      %s24 = sshll.u32 [#allocation2], 4
      %s25 = int_to_ptr.vmem [resolvable:$true] %s24
      %30 = dma.hbm_to_vmem [thread:$0]  %s0, 1792, %s25, [#allocation3], 896, 896, 56
    $region5: #{tpu_custom_call.1} parent=1 // pred_fallthru
      _
    // Predicated region
    $region6: #{tpu_custom_call.1} parent=1 // pred_check
      _
    $region7: #{tpu_custom_call.1} parent=1 // pred_check_branch
      %32 = sbr.rel (0) target = $region9
    $region8: #{tpu_custom_call.1} parent=1 // pred_region
      %s34 = ssub.s32 25088, 25088
      %35 = vsyncadd [#allocation6], %s34
      %s36 = sshll.u32 [#allocation5], 4
      %s37 = int_to_ptr.vmem [resolvable:$true] %s36
      %42 = dma.hbm_to_vmem [thread:$0]  %s1, 25088, %s37, [#allocation6], 256, 256, 16
    $region9: #{tpu_custom_call.1} parent=1 // pred_fallthru
      _
    // Predicated region
    $region10: #{tpu_custom_call.1} parent=1 // pred_check
      _
    $region11: #{tpu_custom_call.1} parent=1 // pred_check_branch
      %44 = sbr.rel (0) target = $region13
    $region12: #{tpu_custom_call.1} parent=1 // pred_region
      %s46 = ssub.s32 64, 64
      %47 = vsyncadd [#allocation6], %s46
      %s49 = sshll.u32 [#allocation7], 4
      %s50 = int_to_ptr.vmem [resolvable:$true] %s49
      %52 = dma.hbm_to_vmem [thread:$0]  %s2, 64, %s50, [#allocation6]
    $region13: #{tpu_custom_call.1} parent=1 // pred_fallthru
      _
    // Predicated region
    $region14: #{tpu_custom_call.1} parent=1 // pred_check
      _
    $region15: #{tpu_custom_call.1} parent=1 // pred_check_branch
      %54 = sbr.rel (0) target = $region17
    $region16: #{tpu_custom_call.1} parent=1 // pred_region
      %s56 = ssub.s32 8192, 8192
      %57 = vsyncadd [#allocation9], %s56
      %s58 = sshll.u32 [#allocation8], 4
      %s59 = int_to_ptr.vmem [resolvable:$true] %s58
      %64 = dma.hbm_to_vmem [thread:$0]  %s3, 8192, %s59, [#allocation9], 128, 128, 8
    $region17: #{tpu_custom_call.1} parent=1 // pred_fallthru
      _
    // Predicated region
    $region18: #{tpu_custom_call.1} parent=1 // pred_check
      _
    $region19: #{tpu_custom_call.1} parent=1 // pred_check_branch
      %66 = sbr.rel (0) target = $region21
    $region20: #{tpu_custom_call.1} parent=1 // pred_region
      _
    $region21: #{tpu_custom_call.1} parent=1 // pred_fallthru
      _
    // Predicated region
    $region22: #{tpu_custom_call.1} parent=1 // pred_check
      _
    $region23: #{tpu_custom_call.1} parent=1 // pred_check_branch
      %68 = sbr.rel (0) target = $region25
    $region24: #{tpu_custom_call.1} parent=1 // pred_region
      %s70 = ssub.s32 2048, 2048
      %71 = vsyncadd [#allocation9], %s70
      %s72 = sshll.u32 [#allocation10], 4
      %s73 = int_to_ptr.vmem [resolvable:$true] %s72
      %78 = dma.hbm_to_vmem [thread:$0]  %s5, 2048, %s73, [#allocation9], 64, 64, 4
    $region25: #{tpu_custom_call.1} parent=1 // pred_fallthru
      _
    // Predicated region
    $region26: #{tpu_custom_call.1} parent=1 // pred_check
      _
    $region27: #{tpu_custom_call.1} parent=1 // pred_check_branch
      %80 = sbr.rel (0) target = $region29
    $region28: #{tpu_custom_call.1} parent=1 // pred_region
      _
    $region29: #{tpu_custom_call.1} parent=1 // pred_fallthru
      _
    // Predicated region
    $region30: #{tpu_custom_call.1} parent=1 // pred_check
      _
    $region31: #{tpu_custom_call.1} parent=1 // pred_check_branch
      %82 = sbr.rel (0) target = $region33
    $region32: #{tpu_custom_call.1} parent=1 // pred_region
      %s84 = ssub.s32 1024, 1024
      %85 = vsyncadd [#allocation12], %s84
      %s86 = sshll.u32 [#allocation11], 4
      %s87 = int_to_ptr.vmem [resolvable:$true] %s86
      %92 = dma.hbm_to_vmem [thread:$0]  %s7, 1024, %s87, [#allocation12], 64, 64, 4
    $region33: #{tpu_custom_call.1} parent=1 // pred_fallthru
      _
    // Predicated region
    $region34: #{tpu_custom_call.1} parent=1 // pred_check
      _
    $region35: #{tpu_custom_call.1} parent=1 // pred_check_branch
      %94 = sbr.rel (0) target = $region37
    $region36: #{tpu_custom_call.1} parent=1 // pred_region
      _
    $region37: #{tpu_custom_call.1} parent=1 // pred_fallthru
      _
    // Predicated region
    $region38: #{tpu_custom_call.1} parent=1 // pred_check
      _
    $region39: #{tpu_custom_call.1} parent=1 // pred_check_branch
      %96 = sbr.rel (0) target = $region41
    $region40: #{tpu_custom_call.1} parent=1 // pred_region
      %97 = dma.done [#allocation3], 1792
    $region41: #{tpu_custom_call.1} parent=1 // pred_fallthru
      _
    // Predicated region
    $region42: #{tpu_custom_call.1} parent=1 // pred_check
      _
    $region43: #{tpu_custom_call.1} parent=1 // pred_check_branch
      %99 = sbr.rel (0) target = $region45
    $region44: #{tpu_custom_call.1} parent=1 // pred_region
      %100 = dma.done [#allocation6], 25088
    $region45: #{tpu_custom_call.1} parent=1 // pred_fallthru
      _
    // Predicated region
    $region46: #{tpu_custom_call.1} parent=1 // pred_check
      _
    $region47: #{tpu_custom_call.1} parent=1 // pred_check_branch
      %102 = sbr.rel (0) target = $region49
    $region48: #{tpu_custom_call.1} parent=1 // pred_region
      %103 = dma.done [#allocation6], 64
    $region49: #{tpu_custom_call.1} parent=1 // pred_fallthru
      _
    // Predicated region
    $region50: #{tpu_custom_call.1} parent=1 // pred_check
      _
    $region51: #{tpu_custom_call.1} parent=1 // pred_check_branch
      %105 = sbr.rel (0) target = $region53
    $region52: #{tpu_custom_call.1} parent=1 // pred_region
      %106 = dma.done [#allocation9], 8192
    $region53: #{tpu_custom_call.1} parent=1 // pred_fallthru
      _
    // Predicated region
    $region54: #{tpu_custom_call.1} parent=1 // pred_check
      _
    $region55: #{tpu_custom_call.1} parent=1 // pred_check_branch
      %108 = sbr.rel (0) target = $region57
    $region56: #{tpu_custom_call.1} parent=1 // pred_region
      %109 = dma.done [#allocation9], 2048
    $region57: #{tpu_custom_call.1} parent=1 // pred_fallthru
      _
    // Predicated region
    $region58: #{tpu_custom_call.1} parent=1 // pred_check
      _
    $region59: #{tpu_custom_call.1} parent=1 // pred_check_branch
      %111 = sbr.rel (0) target = $region61
    $region60: #{tpu_custom_call.1} parent=1 // pred_region
      %112 = dma.done [#allocation12], 1024
    $region61: #{tpu_custom_call.1} parent=1 // pred_fallthru
      _
    %v114 = vld [vmem:[#allocation2] sm:$0xff]
    %v115 = vld [vmem:[#allocation2 + $0x8] sm:$0xff]
    %v116 = vld [vmem:[#allocation2 + $0x10] sm:$0xff]
    %v117 = vld [vmem:[#allocation2 + $0x18] sm:$0xff]
    %v118 = vld [vmem:[#allocation2 + $0x20] sm:$0xff]
    %v119 = vld [vmem:[#allocation2 + $0x28] sm:$0xff]
    %v120 = vld [vmem:[#allocation2 + $0x30] sm:$0xff]
    %v121 = vld [vmem:[#allocation2 + $0x38] sm:$0xff]
    %v122 = vld [vmem:[#allocation2 + $0x40] sm:$0xff]
    %v123 = vld [vmem:[#allocation2 + $0x48] sm:$0xff]
    %v124 = vld [vmem:[#allocation2 + $0x50] sm:$0xff]
    %v125 = vld [vmem:[#allocation2 + $0x58] sm:$0xff]
    %v126 = vld [vmem:[#allocation2 + $0x60] sm:$0xff]
    %v127 = vld [vmem:[#allocation2 + $0x68] sm:$0xff]
    %v128 = vpack.c.bf16 %v121, %v114
    %v129 = vpack.c.bf16 %v122, %v115
    %v130 = vpack.c.bf16 %v123, %v116
    %v131 = vpack.c.bf16 %v124, %v117
    %v132 = vpack.c.bf16 %v125, %v118
    %v133 = vpack.c.bf16 %v126, %v119
    %v134 = vpack.c.bf16 %v127, %v120
    %v135 = vld [vmem:[#allocation5] sm:$0xff]
    %v136 = vld [vmem:[#allocation5 + $0x8] sm:$0xff]
    %v137 = vld [vmem:[#allocation5 + $0x10] sm:$0xff]
    %v138 = vld [vmem:[#allocation5 + $0x18] sm:$0xff]
    %v139 = vld [vmem:[#allocation5 + $0x20] sm:$0xff]
    %v140 = vld [vmem:[#allocation5 + $0x28] sm:$0xff]
    %v141 = vld [vmem:[#allocation5 + $0x30] sm:$0xff]
    %v142 = vld [vmem:[#allocation5 + $0x38] sm:$0xff]
    %v143 = vld [vmem:[#allocation5 + $0x40] sm:$0xff]
    %v144 = vld [vmem:[#allocation5 + $0x48] sm:$0xff]
    %v145 = vld [vmem:[#allocation5 + $0x50] sm:$0xff]
    %v146 = vld [vmem:[#allocation5 + $0x58] sm:$0xff]
    %v147 = vld [vmem:[#allocation5 + $0x60] sm:$0xff]
    %v148 = vld [vmem:[#allocation5 + $0x68] sm:$0xff]
    %v149 = vld [vmem:[#allocation5 + $0x70] sm:$0xff]
    %v150 = vld [vmem:[#allocation5 + $0x78] sm:$0xff]
    %v151 = vld [vmem:[#allocation5 + $0x80] sm:$0xff]
    %v152 = vld [vmem:[#allocation5 + $0x88] sm:$0xff]
    %v153 = vld [vmem:[#allocation5 + $0x90] sm:$0xff]
    %v154 = vld [vmem:[#allocation5 + $0x98] sm:$0xff]
    %v155 = vld [vmem:[#allocation5 + $0xa0] sm:$0xff]
    %v156 = vld [vmem:[#allocation5 + $0xa8] sm:$0xff]
    %v157 = vld [vmem:[#allocation5 + $0xb0] sm:$0xff]
    %v158 = vld [vmem:[#allocation5 + $0xb8] sm:$0xff]
    %v159 = vld [vmem:[#allocation5 + $0xc0] sm:$0xff]
    %v160 = vld [vmem:[#allocation5 + $0xc8] sm:$0xff]
    %v161 = vld [vmem:[#allocation5 + $0xd0] sm:$0xff]
    %v162 = vld [vmem:[#allocation5 + $0xd8] sm:$0xff]
    %v163 = vld [vmem:[#allocation5 + $0xe0] sm:$0xff]
    %v164 = vld [vmem:[#allocation5 + $0xe8] sm:$0xff]
    %v165 = vld [vmem:[#allocation5 + $0xf0] sm:$0xff]
    %v166 = vld [vmem:[#allocation5 + $0xf8] sm:$0xff]
    %v167 = vld [vmem:[#allocation5 + $0x100] sm:$0xff]
    %v168 = vld [vmem:[#allocation5 + $0x108] sm:$0xff]
    %v169 = vld [vmem:[#allocation5 + $0x110] sm:$0xff]
    %v170 = vld [vmem:[#allocation5 + $0x118] sm:$0xff]
    %v171 = vld [vmem:[#allocation5 + $0x120] sm:$0xff]
    %v172 = vld [vmem:[#allocation5 + $0x128] sm:$0xff]
    %v173 = vld [vmem:[#allocation5 + $0x130] sm:$0xff]
    %v174 = vld [vmem:[#allocation5 + $0x138] sm:$0xff]
    %v175 = vld [vmem:[#allocation5 + $0x140] sm:$0xff]
    %v176 = vld [vmem:[#allocation5 + $0x148] sm:$0xff]
    %v177 = vld [vmem:[#allocation5 + $0x150] sm:$0xff]
    %v178 = vld [vmem:[#allocation5 + $0x158] sm:$0xff]
    %v179 = vld [vmem:[#allocation5 + $0x160] sm:$0xff]
    %v180 = vld [vmem:[#allocation5 + $0x168] sm:$0xff]
    %v181 = vld [vmem:[#allocation5 + $0x170] sm:$0xff]
    %v182 = vld [vmem:[#allocation5 + $0x178] sm:$0xff]
    %v183 = vld [vmem:[#allocation5 + $0x180] sm:$0xff]
    %v184 = vld [vmem:[#allocation5 + $0x188] sm:$0xff]
    %v185 = vld [vmem:[#allocation5 + $0x190] sm:$0xff]
    %v186 = vld [vmem:[#allocation5 + $0x198] sm:$0xff]
    %v187 = vld [vmem:[#allocation5 + $0x1a0] sm:$0xff]
    %v188 = vld [vmem:[#allocation5 + $0x1a8] sm:$0xff]
    %v189 = vld [vmem:[#allocation5 + $0x1b0] sm:$0xff]
    %v190 = vld [vmem:[#allocation5 + $0x1b8] sm:$0xff]
    %v191 = vld [vmem:[#allocation5 + $0x1c0] sm:$0xff]
    %v192 = vld [vmem:[#allocation5 + $0x1c8] sm:$0xff]
    %v193 = vld [vmem:[#allocation5 + $0x1d0] sm:$0xff]
    %v194 = vld [vmem:[#allocation5 + $0x1d8] sm:$0xff]
    %v195 = vld [vmem:[#allocation5 + $0x1e0] sm:$0xff]
    %v196 = vld [vmem:[#allocation5 + $0x1e8] sm:$0xff]
    %v197 = vld [vmem:[#allocation5 + $0x1f0] sm:$0xff]
    %v198 = vld [vmem:[#allocation5 + $0x1f8] sm:$0xff]
    %v199 = vld [vmem:[#allocation5 + $0x200] sm:$0xff]
    %v200 = vld [vmem:[#allocation5 + $0x208] sm:$0xff]
    %v201 = vld [vmem:[#allocation5 + $0x210] sm:$0xff]
    %v202 = vld [vmem:[#allocation5 + $0x218] sm:$0xff]
    %v203 = vld [vmem:[#allocation5 + $0x220] sm:$0xff]
    %v204 = vld [vmem:[#allocation5 + $0x228] sm:$0xff]
    %v205 = vld [vmem:[#allocation5 + $0x230] sm:$0xff]
    %v206 = vld [vmem:[#allocation5 + $0x238] sm:$0xff]
    %v207 = vld [vmem:[#allocation5 + $0x240] sm:$0xff]
    %v208 = vld [vmem:[#allocation5 + $0x248] sm:$0xff]
    %v209 = vld [vmem:[#allocation5 + $0x250] sm:$0xff]
    %v210 = vld [vmem:[#allocation5 + $0x258] sm:$0xff]
    %v211 = vld [vmem:[#allocation5 + $0x260] sm:$0xff]
    %v212 = vld [vmem:[#allocation5 + $0x268] sm:$0xff]
    %v213 = vld [vmem:[#allocation5 + $0x270] sm:$0xff]
    %v214 = vld [vmem:[#allocation5 + $0x278] sm:$0xff]
    %v215 = vld [vmem:[#allocation5 + $0x280] sm:$0xff]
    %v216 = vld [vmem:[#allocation5 + $0x288] sm:$0xff]
    %v217 = vld [vmem:[#allocation5 + $0x290] sm:$0xff]
    %v218 = vld [vmem:[#allocation5 + $0x298] sm:$0xff]
    %v219 = vld [vmem:[#allocation5 + $0x2a0] sm:$0xff]
    %v220 = vld [vmem:[#allocation5 + $0x2a8] sm:$0xff]
    %v221 = vld [vmem:[#allocation5 + $0x2b0] sm:$0xff]
    %v222 = vld [vmem:[#allocation5 + $0x2b8] sm:$0xff]
    %v223 = vld [vmem:[#allocation5 + $0x2c0] sm:$0xff]
    %v224 = vld [vmem:[#allocation5 + $0x2c8] sm:$0xff]
    %v225 = vld [vmem:[#allocation5 + $0x2d0] sm:$0xff]
    %v226 = vld [vmem:[#allocation5 + $0x2d8] sm:$0xff]
    %v227 = vld [vmem:[#allocation5 + $0x2e0] sm:$0xff]
    %v228 = vld [vmem:[#allocation5 + $0x2e8] sm:$0xff]
    %v229 = vld [vmem:[#allocation5 + $0x2f0] sm:$0xff]
    %v230 = vld [vmem:[#allocation5 + $0x2f8] sm:$0xff]
    %v231 = vld [vmem:[#allocation5 + $0x300] sm:$0xff]
    %v232 = vld [vmem:[#allocation5 + $0x308] sm:$0xff]
    %v233 = vld [vmem:[#allocation5 + $0x310] sm:$0xff]
    %v234 = vld [vmem:[#allocation5 + $0x318] sm:$0xff]
    %v235 = vld [vmem:[#allocation5 + $0x320] sm:$0xff]
    %v236 = vld [vmem:[#allocation5 + $0x328] sm:$0xff]
    %v237 = vld [vmem:[#allocation5 + $0x330] sm:$0xff]
    %v238 = vld [vmem:[#allocation5 + $0x338] sm:$0xff]
    %v239 = vld [vmem:[#allocation5 + $0x340] sm:$0xff]
    %v240 = vld [vmem:[#allocation5 + $0x348] sm:$0xff]
    %v241 = vld [vmem:[#allocation5 + $0x350] sm:$0xff]
    %v242 = vld [vmem:[#allocation5 + $0x358] sm:$0xff]
    %v243 = vld [vmem:[#allocation5 + $0x360] sm:$0xff]
    %v244 = vld [vmem:[#allocation5 + $0x368] sm:$0xff]
    %v245 = vld [vmem:[#allocation5 + $0x370] sm:$0xff]
    %v246 = vld [vmem:[#allocation5 + $0x378] sm:$0xff]
    %v247 = vld [vmem:[#allocation5 + $0x380] sm:$0xff]
    %v248 = vld [vmem:[#allocation5 + $0x388] sm:$0xff]
    %v249 = vld [vmem:[#allocation5 + $0x390] sm:$0xff]
    %v250 = vld [vmem:[#allocation5 + $0x398] sm:$0xff]
    %v251 = vld [vmem:[#allocation5 + $0x3a0] sm:$0xff]
    %v252 = vld [vmem:[#allocation5 + $0x3a8] sm:$0xff]
    %v253 = vld [vmem:[#allocation5 + $0x3b0] sm:$0xff]
    %v254 = vld [vmem:[#allocation5 + $0x3b8] sm:$0xff]
    %v255 = vld [vmem:[#allocation5 + $0x3c0] sm:$0xff]
    %v256 = vld [vmem:[#allocation5 + $0x3c8] sm:$0xff]
    %v257 = vld [vmem:[#allocation5 + $0x3d0] sm:$0xff]
    %v258 = vld [vmem:[#allocation5 + $0x3d8] sm:$0xff]
    %v259 = vld [vmem:[#allocation5 + $0x3e0] sm:$0xff]
    %v260 = vld [vmem:[#allocation5 + $0x3e8] sm:$0xff]
    %v261 = vld [vmem:[#allocation5 + $0x3f0] sm:$0xff]
    %v262 = vld [vmem:[#allocation5 + $0x3f8] sm:$0xff]
    %v263 = vld [vmem:[#allocation5 + $0x400] sm:$0xff]
    %v264 = vld [vmem:[#allocation5 + $0x408] sm:$0xff]
    %v265 = vld [vmem:[#allocation5 + $0x410] sm:$0xff]
    %v266 = vld [vmem:[#allocation5 + $0x418] sm:$0xff]
    %v267 = vld [vmem:[#allocation5 + $0x420] sm:$0xff]
    %v268 = vld [vmem:[#allocation5 + $0x428] sm:$0xff]
    %v269 = vld [vmem:[#allocation5 + $0x430] sm:$0xff]
    %v270 = vld [vmem:[#allocation5 + $0x438] sm:$0xff]
    %v271 = vld [vmem:[#allocation5 + $0x440] sm:$0xff]
    %v272 = vld [vmem:[#allocation5 + $0x448] sm:$0xff]
    %v273 = vld [vmem:[#allocation5 + $0x450] sm:$0xff]
    %v274 = vld [vmem:[#allocation5 + $0x458] sm:$0xff]
    %v275 = vld [vmem:[#allocation5 + $0x460] sm:$0xff]
    %v276 = vld [vmem:[#allocation5 + $0x468] sm:$0xff]
    %v277 = vld [vmem:[#allocation5 + $0x470] sm:$0xff]
    %v278 = vld [vmem:[#allocation5 + $0x478] sm:$0xff]
    %v279 = vld [vmem:[#allocation5 + $0x480] sm:$0xff]
    %v280 = vld [vmem:[#allocation5 + $0x488] sm:$0xff]
    %v281 = vld [vmem:[#allocation5 + $0x490] sm:$0xff]
    %v282 = vld [vmem:[#allocation5 + $0x498] sm:$0xff]
    %v283 = vld [vmem:[#allocation5 + $0x4a0] sm:$0xff]
    %v284 = vld [vmem:[#allocation5 + $0x4a8] sm:$0xff]
    %v285 = vld [vmem:[#allocation5 + $0x4b0] sm:$0xff]
    %v286 = vld [vmem:[#allocation5 + $0x4b8] sm:$0xff]
    %v287 = vld [vmem:[#allocation5 + $0x4c0] sm:$0xff]
    %v288 = vld [vmem:[#allocation5 + $0x4c8] sm:$0xff]
    %v289 = vld [vmem:[#allocation5 + $0x4d0] sm:$0xff]
    %v290 = vld [vmem:[#allocation5 + $0x4d8] sm:$0xff]
    %v291 = vld [vmem:[#allocation5 + $0x4e0] sm:$0xff]
    %v292 = vld [vmem:[#allocation5 + $0x4e8] sm:$0xff]
    %v293 = vld [vmem:[#allocation5 + $0x4f0] sm:$0xff]
    %v294 = vld [vmem:[#allocation5 + $0x4f8] sm:$0xff]
    %v295 = vld [vmem:[#allocation5 + $0x500] sm:$0xff]
    %v296 = vld [vmem:[#allocation5 + $0x508] sm:$0xff]
    %v297 = vld [vmem:[#allocation5 + $0x510] sm:$0xff]
    %v298 = vld [vmem:[#allocation5 + $0x518] sm:$0xff]
    %v299 = vld [vmem:[#allocation5 + $0x520] sm:$0xff]
    %v300 = vld [vmem:[#allocation5 + $0x528] sm:$0xff]
    %v301 = vld [vmem:[#allocation5 + $0x530] sm:$0xff]
    %v302 = vld [vmem:[#allocation5 + $0x538] sm:$0xff]
    %v303 = vld [vmem:[#allocation5 + $0x540] sm:$0xff]
    %v304 = vld [vmem:[#allocation5 + $0x548] sm:$0xff]
    %v305 = vld [vmem:[#allocation5 + $0x550] sm:$0xff]
    %v306 = vld [vmem:[#allocation5 + $0x558] sm:$0xff]
    %v307 = vld [vmem:[#allocation5 + $0x560] sm:$0xff]
    %v308 = vld [vmem:[#allocation5 + $0x568] sm:$0xff]
    %v309 = vld [vmem:[#allocation5 + $0x570] sm:$0xff]
    %v310 = vld [vmem:[#allocation5 + $0x578] sm:$0xff]
    %v311 = vld [vmem:[#allocation5 + $0x580] sm:$0xff]
    %v312 = vld [vmem:[#allocation5 + $0x588] sm:$0xff]
    %v313 = vld [vmem:[#allocation5 + $0x590] sm:$0xff]
    %v314 = vld [vmem:[#allocation5 + $0x598] sm:$0xff]
    %v315 = vld [vmem:[#allocation5 + $0x5a0] sm:$0xff]
    %v316 = vld [vmem:[#allocation5 + $0x5a8] sm:$0xff]
    %v317 = vld [vmem:[#allocation5 + $0x5b0] sm:$0xff]
    %v318 = vld [vmem:[#allocation5 + $0x5b8] sm:$0xff]
    %v319 = vld [vmem:[#allocation5 + $0x5c0] sm:$0xff]
    %v320 = vld [vmem:[#allocation5 + $0x5c8] sm:$0xff]
    %v321 = vld [vmem:[#allocation5 + $0x5d0] sm:$0xff]
    %v322 = vld [vmem:[#allocation5 + $0x5d8] sm:$0xff]
    %v323 = vld [vmem:[#allocation5 + $0x5e0] sm:$0xff]
    %v324 = vld [vmem:[#allocation5 + $0x5e8] sm:$0xff]
    %v325 = vld [vmem:[#allocation5 + $0x5f0] sm:$0xff]
    %v326 = vld [vmem:[#allocation5 + $0x5f8] sm:$0xff]
    %v327 = vld [vmem:[#allocation5 + $0x600] sm:$0xff]
    %v328 = vld [vmem:[#allocation5 + $0x608] sm:$0xff]
    %v329 = vld [vmem:[#allocation5 + $0x610] sm:$0xff]
    %v330 = vld [vmem:[#allocation5 + $0x618] sm:$0xff]
    %v331 = vld [vmem:[#allocation7] sm:$0xf]
    %v333 = vlaneseq
    %v334 = vshrl.u32 %v333, 7
    %v335 = vsub.s32 0, %v334
    %v336 = vrot.slane %v331, %v335
    %v337 = vlaneseq
    %v338 = vshrl.u32 %v337, 7
    %v339 = vsub.s32 1, %v338
    %v340 = vrot.slane %v331, %v339
    %v341 = vlaneseq
    %v342 = vshrl.u32 %v341, 7
    %v343 = vsub.s32 2, %v342
    %v344 = vrot.slane %v331, %v343
    %v345 = vlaneseq
    %v346 = vshrl.u32 %v345, 7
    %v347 = vsub.s32 3, %v346
    %v348 = vrot.slane %v331, %v347
    %v549 = vunpack.c.l.b16 %v135
    %v550 = vunpack.c.h.b16 %v135
    %v551 = vunpack.c.l.b16 %v136
    %v552 = vunpack.c.h.b16 %v136
    %v553 = vunpack.c.l.b16 %v137
    %v554 = vunpack.c.h.b16 %v137
    %v555 = vunpack.c.l.b16 %v138
    %v556 = vunpack.c.h.b16 %v138
    %v557 = vunpack.c.l.b16 %v139
    %v558 = vunpack.c.h.b16 %v139
    %v559 = vunpack.c.l.b16 %v140
    %v560 = vunpack.c.h.b16 %v140
    %v561 = vunpack.c.l.b16 %v141
    %v562 = vunpack.c.h.b16 %v141
    %v563 = vunpack.c.l.b16 %v142
    %v564 = vunpack.c.h.b16 %v142
    %v565 = vunpack.c.l.b16 %v143
    %v566 = vunpack.c.h.b16 %v143
    %v567 = vunpack.c.l.b16 %v144
    %v568 = vunpack.c.h.b16 %v144
    %v569 = vunpack.c.l.b16 %v145
    %v570 = vunpack.c.h.b16 %v145
    %v571 = vunpack.c.l.b16 %v146
    %v572 = vunpack.c.h.b16 %v146
    %v573 = vunpack.c.l.b16 %v147
    %v574 = vunpack.c.h.b16 %v147
    %v575 = vunpack.c.l.b16 %v148
    %v576 = vunpack.c.h.b16 %v148
    %v577 = vunpack.c.l.b16 %v149
    %v578 = vunpack.c.h.b16 %v149
    %v579 = vunpack.c.l.b16 %v150
    %v580 = vunpack.c.h.b16 %v150
    %v581 = vunpack.c.l.b16 %v151
    %v582 = vunpack.c.h.b16 %v151
    %v583 = vunpack.c.l.b16 %v152
    %v584 = vunpack.c.h.b16 %v152
    %v585 = vunpack.c.l.b16 %v153
    %v586 = vunpack.c.h.b16 %v153
    %v587 = vunpack.c.l.b16 %v154
    %v588 = vunpack.c.h.b16 %v154
    %v589 = vunpack.c.l.b16 %v155
    %v590 = vunpack.c.h.b16 %v155
    %v591 = vunpack.c.l.b16 %v156
    %v592 = vunpack.c.h.b16 %v156
    %v593 = vunpack.c.l.b16 %v157
    %v594 = vunpack.c.h.b16 %v157
    %v595 = vunpack.c.l.b16 %v158
    %v596 = vunpack.c.h.b16 %v158
    %v597 = vunpack.c.l.b16 %v159
    %v598 = vunpack.c.h.b16 %v159
    %v599 = vunpack.c.l.b16 %v160
    %v600 = vunpack.c.h.b16 %v160
    %v601 = vunpack.c.l.b16 %v161
    %v602 = vunpack.c.h.b16 %v161
    %v603 = vunpack.c.l.b16 %v162
    %v604 = vunpack.c.h.b16 %v162
    %v605 = vunpack.c.l.b16 %v163
    %v606 = vunpack.c.h.b16 %v163
    %v607 = vunpack.c.l.b16 %v164
    %v608 = vunpack.c.h.b16 %v164
    %v609 = vunpack.c.l.b16 %v165
    %v610 = vunpack.c.h.b16 %v165
    %v611 = vunpack.c.l.b16 %v166
    %v612 = vunpack.c.h.b16 %v166
    %v613 = vunpack.c.l.b16 %v167
    %v614 = vunpack.c.h.b16 %v167
    %v615 = vunpack.c.l.b16 %v168
    %v616 = vunpack.c.h.b16 %v168
    %v617 = vunpack.c.l.b16 %v169
    %v618 = vunpack.c.h.b16 %v169
    %v619 = vunpack.c.l.b16 %v170
    %v620 = vunpack.c.h.b16 %v170
    %v621 = vunpack.c.l.b16 %v171
    %v622 = vunpack.c.h.b16 %v171
    %v623 = vunpack.c.l.b16 %v172
    %v624 = vunpack.c.h.b16 %v172
    %v625 = vunpack.c.l.b16 %v173
    %v626 = vunpack.c.h.b16 %v173
    %v627 = vunpack.c.l.b16 %v174
    %v628 = vunpack.c.h.b16 %v174
    %v629 = vunpack.c.l.b16 %v175
    %v630 = vunpack.c.h.b16 %v175
    %v631 = vunpack.c.l.b16 %v176
    %v632 = vunpack.c.h.b16 %v176
    %v633 = vunpack.c.l.b16 %v177
    %v634 = vunpack.c.h.b16 %v177
    %v635 = vunpack.c.l.b16 %v178
    %v636 = vunpack.c.h.b16 %v178
    %v637 = vunpack.c.l.b16 %v179
    %v638 = vunpack.c.h.b16 %v179
    %v639 = vunpack.c.l.b16 %v180
    %v640 = vunpack.c.h.b16 %v180
    %v641 = vunpack.c.l.b16 %v181
    %v642 = vunpack.c.h.b16 %v181
    %v643 = vunpack.c.l.b16 %v182
    %v644 = vunpack.c.h.b16 %v182
    %v645 = vunpack.c.l.b16 %v183
    %v646 = vunpack.c.h.b16 %v183
    %v647 = vunpack.c.l.b16 %v184
    %v648 = vunpack.c.h.b16 %v184
    %v649 = vunpack.c.l.b16 %v185
    %v650 = vunpack.c.h.b16 %v185
    %v651 = vunpack.c.l.b16 %v186
    %v652 = vunpack.c.h.b16 %v186
    %v653 = vunpack.c.l.b16 %v187
    %v654 = vunpack.c.h.b16 %v187
    %v655 = vunpack.c.l.b16 %v188
    %v656 = vunpack.c.h.b16 %v188
    %v657 = vunpack.c.l.b16 %v189
    %v658 = vunpack.c.h.b16 %v189
    %v659 = vunpack.c.l.b16 %v190
    %v660 = vunpack.c.h.b16 %v190
    %v661 = vunpack.c.l.b16 %v191
    %v662 = vunpack.c.h.b16 %v191
    %v663 = vunpack.c.l.b16 %v192
    %v664 = vunpack.c.h.b16 %v192
    %v665 = vunpack.c.l.b16 %v193
    %v666 = vunpack.c.h.b16 %v193
    %v667 = vunpack.c.l.b16 %v194
    %v668 = vunpack.c.h.b16 %v194
    %v669 = vunpack.c.l.b16 %v195
    %v670 = vunpack.c.h.b16 %v195
    %v671 = vunpack.c.l.b16 %v196
    %v672 = vunpack.c.h.b16 %v196
    %v673 = vunpack.c.l.b16 %v197
    %v674 = vunpack.c.h.b16 %v197
    %v675 = vunpack.c.l.b16 %v198
    %v676 = vunpack.c.h.b16 %v198
    %v677 = vunpack.c.l.b16 %v199
    %v678 = vunpack.c.h.b16 %v199
    %v679 = vunpack.c.l.b16 %v200
    %v680 = vunpack.c.h.b16 %v200
    %v681 = vunpack.c.l.b16 %v201
    %v682 = vunpack.c.h.b16 %v201
    %v683 = vunpack.c.l.b16 %v202
    %v684 = vunpack.c.h.b16 %v202
    %v685 = vunpack.c.l.b16 %v203
    %v686 = vunpack.c.h.b16 %v203
    %v687 = vunpack.c.l.b16 %v204
    %v688 = vunpack.c.h.b16 %v204
    %v689 = vunpack.c.l.b16 %v205
    %v690 = vunpack.c.h.b16 %v205
    %v691 = vunpack.c.l.b16 %v206
    %v692 = vunpack.c.h.b16 %v206
    %v693 = vunpack.c.l.b16 %v207
    %v694 = vunpack.c.h.b16 %v207
    %v695 = vunpack.c.l.b16 %v208
    %v696 = vunpack.c.h.b16 %v208
    %v697 = vunpack.c.l.b16 %v209
    %v698 = vunpack.c.h.b16 %v209
    %v699 = vunpack.c.l.b16 %v210
    %v700 = vunpack.c.h.b16 %v210
    %v701 = vunpack.c.l.b16 %v211
    %v702 = vunpack.c.h.b16 %v211
    %v703 = vunpack.c.l.b16 %v212
    %v704 = vunpack.c.h.b16 %v212
    %v705 = vunpack.c.l.b16 %v213
    %v706 = vunpack.c.h.b16 %v213
    %v707 = vunpack.c.l.b16 %v214
    %v708 = vunpack.c.h.b16 %v214
    %v709 = vunpack.c.l.b16 %v215
    %v710 = vunpack.c.h.b16 %v215
    %v711 = vunpack.c.l.b16 %v216
    %v712 = vunpack.c.h.b16 %v216
    %v713 = vunpack.c.l.b16 %v217
    %v714 = vunpack.c.h.b16 %v217
    %v715 = vunpack.c.l.b16 %v218
    %v716 = vunpack.c.h.b16 %v218
    %v717 = vunpack.c.l.b16 %v219
    %v718 = vunpack.c.h.b16 %v219
    %v719 = vunpack.c.l.b16 %v220
    %v720 = vunpack.c.h.b16 %v220
    %v721 = vunpack.c.l.b16 %v221
    %v722 = vunpack.c.h.b16 %v221
    %v723 = vunpack.c.l.b16 %v222
    %v724 = vunpack.c.h.b16 %v222
    %v725 = vunpack.c.l.b16 %v223
    %v726 = vunpack.c.h.b16 %v223
    %v727 = vunpack.c.l.b16 %v224
    %v728 = vunpack.c.h.b16 %v224
    %v729 = vunpack.c.l.b16 %v225
    %v730 = vunpack.c.h.b16 %v225
    %v731 = vunpack.c.l.b16 %v226
    %v732 = vunpack.c.h.b16 %v226
    %v733 = vunpack.c.l.b16 %v227
    %v734 = vunpack.c.h.b16 %v227
    %v735 = vunpack.c.l.b16 %v228
    %v736 = vunpack.c.h.b16 %v228
    %v737 = vunpack.c.l.b16 %v229
    %v738 = vunpack.c.h.b16 %v229
    %v739 = vunpack.c.l.b16 %v230
    %v740 = vunpack.c.h.b16 %v230
    %v741 = vunpack.c.l.b16 %v231
    %v742 = vunpack.c.h.b16 %v231
    %v743 = vunpack.c.l.b16 %v232
    %v744 = vunpack.c.h.b16 %v232
    %v745 = vunpack.c.l.b16 %v233
    %v746 = vunpack.c.h.b16 %v233
    %v747 = vunpack.c.l.b16 %v234
    %v748 = vunpack.c.h.b16 %v234
    %v749 = vunpack.c.l.b16 %v235
    %v750 = vunpack.c.h.b16 %v235
    %v751 = vunpack.c.l.b16 %v236
    %v752 = vunpack.c.h.b16 %v236
    %v753 = vunpack.c.l.b16 %v237
    %v754 = vunpack.c.h.b16 %v237
    %v755 = vunpack.c.l.b16 %v238
    %v756 = vunpack.c.h.b16 %v238
    %v757 = vunpack.c.l.b16 %v239
    %v758 = vunpack.c.h.b16 %v239
    %v759 = vunpack.c.l.b16 %v240
    %v760 = vunpack.c.h.b16 %v240
    %v761 = vunpack.c.l.b16 %v241
    %v762 = vunpack.c.h.b16 %v241
    %v763 = vunpack.c.l.b16 %v242
    %v764 = vunpack.c.h.b16 %v242
    %v765 = vunpack.c.l.b16 %v243
    %v766 = vunpack.c.h.b16 %v243
    %v767 = vunpack.c.l.b16 %v244
    %v768 = vunpack.c.h.b16 %v244
    %v769 = vunpack.c.l.b16 %v245
    %v770 = vunpack.c.h.b16 %v245
    %v771 = vunpack.c.l.b16 %v246
    %v772 = vunpack.c.h.b16 %v246
    %v773 = vunpack.c.l.b16 %v247
    %v774 = vunpack.c.h.b16 %v247
    %v775 = vunpack.c.l.b16 %v248
    %v776 = vunpack.c.h.b16 %v248
    %v777 = vunpack.c.l.b16 %v249
    %v778 = vunpack.c.h.b16 %v249
    %v779 = vunpack.c.l.b16 %v250
    %v780 = vunpack.c.h.b16 %v250
    %v781 = vunpack.c.l.b16 %v251
    %v782 = vunpack.c.h.b16 %v251
    %v783 = vunpack.c.l.b16 %v252
    %v784 = vunpack.c.h.b16 %v252
    %v785 = vunpack.c.l.b16 %v253
    %v786 = vunpack.c.h.b16 %v253
    %v787 = vunpack.c.l.b16 %v254
    %v788 = vunpack.c.h.b16 %v254
    %v789 = vunpack.c.l.b16 %v255
    %v790 = vunpack.c.h.b16 %v255
    %v791 = vunpack.c.l.b16 %v256
    %v792 = vunpack.c.h.b16 %v256
    %v793 = vunpack.c.l.b16 %v257
    %v794 = vunpack.c.h.b16 %v257
    %v795 = vunpack.c.l.b16 %v258
    %v796 = vunpack.c.h.b16 %v258
    %v797 = vunpack.c.l.b16 %v259
    %v798 = vunpack.c.h.b16 %v259
    %v799 = vunpack.c.l.b16 %v260
    %v800 = vunpack.c.h.b16 %v260
    %v801 = vunpack.c.l.b16 %v261
    %v802 = vunpack.c.h.b16 %v261
    %v803 = vunpack.c.l.b16 %v262
    %v804 = vunpack.c.h.b16 %v262
    %v805 = vunpack.c.l.b16 %v263
    %v806 = vunpack.c.h.b16 %v263
    %v807 = vunpack.c.l.b16 %v264
    %v808 = vunpack.c.h.b16 %v264
    %v809 = vunpack.c.l.b16 %v265
    %v810 = vunpack.c.h.b16 %v265
    %v811 = vunpack.c.l.b16 %v266
    %v812 = vunpack.c.h.b16 %v266
    %v813 = vunpack.c.l.b16 %v267
    %v814 = vunpack.c.h.b16 %v267
    %v815 = vunpack.c.l.b16 %v268
    %v816 = vunpack.c.h.b16 %v268
    %v817 = vunpack.c.l.b16 %v269
    %v818 = vunpack.c.h.b16 %v269
    %v819 = vunpack.c.l.b16 %v270
    %v820 = vunpack.c.h.b16 %v270
    %v821 = vunpack.c.l.b16 %v271
    %v822 = vunpack.c.h.b16 %v271
    %v823 = vunpack.c.l.b16 %v272
    %v824 = vunpack.c.h.b16 %v272
    %v825 = vunpack.c.l.b16 %v273
    %v826 = vunpack.c.h.b16 %v273
    %v827 = vunpack.c.l.b16 %v274
    %v828 = vunpack.c.h.b16 %v274
    %v829 = vunpack.c.l.b16 %v275
    %v830 = vunpack.c.h.b16 %v275
    %v831 = vunpack.c.l.b16 %v276
    %v832 = vunpack.c.h.b16 %v276
    %v833 = vunpack.c.l.b16 %v277
    %v834 = vunpack.c.h.b16 %v277
    %v835 = vunpack.c.l.b16 %v278
    %v836 = vunpack.c.h.b16 %v278
    %v837 = vunpack.c.l.b16 %v279
    %v838 = vunpack.c.h.b16 %v279
    %v839 = vunpack.c.l.b16 %v280
    %v840 = vunpack.c.h.b16 %v280
    %v841 = vunpack.c.l.b16 %v281
    %v842 = vunpack.c.h.b16 %v281
    %v843 = vunpack.c.l.b16 %v282
    %v844 = vunpack.c.h.b16 %v282
    %v845 = vunpack.c.l.b16 %v283
    %v846 = vunpack.c.h.b16 %v283
    %v847 = vunpack.c.l.b16 %v284
    %v848 = vunpack.c.h.b16 %v284
    %v849 = vunpack.c.l.b16 %v285
    %v850 = vunpack.c.h.b16 %v285
    %v851 = vunpack.c.l.b16 %v286
    %v852 = vunpack.c.h.b16 %v286
    %v853 = vunpack.c.l.b16 %v287
    %v854 = vunpack.c.h.b16 %v287
    %v855 = vunpack.c.l.b16 %v288
    %v856 = vunpack.c.h.b16 %v288
    %v857 = vunpack.c.l.b16 %v289
    %v858 = vunpack.c.h.b16 %v289
    %v859 = vunpack.c.l.b16 %v290
    %v860 = vunpack.c.h.b16 %v290
    %v861 = vunpack.c.l.b16 %v291
    %v862 = vunpack.c.h.b16 %v291
    %v863 = vunpack.c.l.b16 %v292
    %v864 = vunpack.c.h.b16 %v292
    %v865 = vunpack.c.l.b16 %v293
    %v866 = vunpack.c.h.b16 %v293
    %v867 = vunpack.c.l.b16 %v294
    %v868 = vunpack.c.h.b16 %v294
    %v869 = vunpack.c.l.b16 %v295
    %v870 = vunpack.c.h.b16 %v295
    %v871 = vunpack.c.l.b16 %v296
    %v872 = vunpack.c.h.b16 %v296
    %v873 = vunpack.c.l.b16 %v297
    %v874 = vunpack.c.h.b16 %v297
    %v875 = vunpack.c.l.b16 %v298
    %v876 = vunpack.c.h.b16 %v298
    %v877 = vunpack.c.l.b16 %v299
    %v878 = vunpack.c.h.b16 %v299
    %v879 = vunpack.c.l.b16 %v300
    %v880 = vunpack.c.h.b16 %v300
    %v881 = vunpack.c.l.b16 %v301
    %v882 = vunpack.c.h.b16 %v301
    %v883 = vunpack.c.l.b16 %v302
    %v884 = vunpack.c.h.b16 %v302
    %v885 = vunpack.c.l.b16 %v303
    %v886 = vunpack.c.h.b16 %v303
    %v887 = vunpack.c.l.b16 %v304
    %v888 = vunpack.c.h.b16 %v304
    %v889 = vunpack.c.l.b16 %v305
    %v890 = vunpack.c.h.b16 %v305
    %v891 = vunpack.c.l.b16 %v306
    %v892 = vunpack.c.h.b16 %v306
    %v893 = vunpack.c.l.b16 %v307
    %v894 = vunpack.c.h.b16 %v307
    %v895 = vunpack.c.l.b16 %v308
    %v896 = vunpack.c.h.b16 %v308
    %v897 = vunpack.c.l.b16 %v309
    %v898 = vunpack.c.h.b16 %v309
    %v899 = vunpack.c.l.b16 %v310
    %v900 = vunpack.c.h.b16 %v310
    %v901 = vunpack.c.l.b16 %v311
    %v902 = vunpack.c.h.b16 %v311
    %v903 = vunpack.c.l.b16 %v312
    %v904 = vunpack.c.h.b16 %v312
    %v905 = vunpack.c.l.b16 %v313
    %v906 = vunpack.c.h.b16 %v313
    %v907 = vunpack.c.l.b16 %v314
    %v908 = vunpack.c.h.b16 %v314
    %v909 = vunpack.c.l.b16 %v315
    %v910 = vunpack.c.h.b16 %v315
    %v911 = vunpack.c.l.b16 %v316
    %v912 = vunpack.c.h.b16 %v316
    %v913 = vunpack.c.l.b16 %v317
    %v914 = vunpack.c.h.b16 %v317
    %v915 = vunpack.c.l.b16 %v318
    %v916 = vunpack.c.h.b16 %v318
    %v917 = vunpack.c.l.b16 %v319
    %v918 = vunpack.c.h.b16 %v319
    %v919 = vunpack.c.l.b16 %v320
    %v920 = vunpack.c.h.b16 %v320
    %v921 = vunpack.c.l.b16 %v321
    %v922 = vunpack.c.h.b16 %v321
    %v923 = vunpack.c.l.b16 %v322
    %v924 = vunpack.c.h.b16 %v322
    %v925 = vunpack.c.l.b16 %v323
    %v926 = vunpack.c.h.b16 %v323
    %v927 = vunpack.c.l.b16 %v324
    %v928 = vunpack.c.h.b16 %v324
    %v929 = vunpack.c.l.b16 %v325
    %v930 = vunpack.c.h.b16 %v325
    %v931 = vunpack.c.l.b16 %v326
    %v932 = vunpack.c.h.b16 %v326
    %v933 = vunpack.c.l.b16 %v327
    %v934 = vunpack.c.h.b16 %v327
    %v935 = vunpack.c.l.b16 %v328
    %v936 = vunpack.c.h.b16 %v328
    %v937 = vunpack.c.l.b16 %v329
    %v938 = vunpack.c.h.b16 %v329
    %v939 = vunpack.c.l.b16 %v330
    %v940 = vunpack.c.h.b16 %v330
    %v941 = vpack.c.b16 %v553, %v549
    %v942 = vpack.c.b16 %v554, %v550
    %v943 = vpack.c.b16 %v555, %v551
    %v944 = vpack.c.b16 %v556, %v552
    %v945 = vpack.c.b16 %v561, %v557
    %v946 = vpack.c.b16 %v562, %v558
    %v947 = vpack.c.b16 %v563, %v559
    %v948 = vpack.c.b16 %v564, %v560
    %v949 = vpack.c.b16 %v569, %v565
    %v950 = vpack.c.b16 %v570, %v566
    %v951 = vpack.c.b16 %v571, %v567
    %v952 = vpack.c.b16 %v572, %v568
    %v953 = vpack.c.b16 %v577, %v573
    %v954 = vpack.c.b16 %v578, %v574
    %v955 = vpack.c.b16 %v579, %v575
    %v956 = vpack.c.b16 %v580, %v576
    %v957 = vpack.c.b16 %v585, %v581
    %v958 = vpack.c.b16 %v586, %v582
    %v959 = vpack.c.b16 %v587, %v583
    %v960 = vpack.c.b16 %v588, %v584
    %v961 = vpack.c.b16 %v593, %v589
    %v962 = vpack.c.b16 %v594, %v590
    %v963 = vpack.c.b16 %v595, %v591
    %v964 = vpack.c.b16 %v596, %v592
    %v965 = vpack.c.b16 %v601, %v597
    %v966 = vpack.c.b16 %v602, %v598
    %v967 = vpack.c.b16 %v603, %v599
    %v968 = vpack.c.b16 %v604, %v600
    %v969 = vpack.c.b16 %v609, %v605
    %v970 = vpack.c.b16 %v610, %v606
    %v971 = vpack.c.b16 %v611, %v607
    %v972 = vpack.c.b16 %v612, %v608
    %v973 = vpack.c.b16 %v617, %v613
    %v974 = vpack.c.b16 %v618, %v614
    %v975 = vpack.c.b16 %v619, %v615
    %v976 = vpack.c.b16 %v620, %v616
    %v977 = vpack.c.b16 %v625, %v621
    %v978 = vpack.c.b16 %v626, %v622
    %v979 = vpack.c.b16 %v627, %v623
    %v980 = vpack.c.b16 %v628, %v624
    %v981 = vpack.c.b16 %v633, %v629
    %v982 = vpack.c.b16 %v634, %v630
    %v983 = vpack.c.b16 %v635, %v631
    %v984 = vpack.c.b16 %v636, %v632
    %v985 = vpack.c.b16 %v641, %v637
    %v986 = vpack.c.b16 %v642, %v638
    %v987 = vpack.c.b16 %v643, %v639
    %v988 = vpack.c.b16 %v644, %v640
    %v989 = vpack.c.b16 %v649, %v645
    %v990 = vpack.c.b16 %v650, %v646
    %v991 = vpack.c.b16 %v651, %v647
    %v992 = vpack.c.b16 %v652, %v648
    %v993 = vpack.c.b16 %v657, %v653
    %v994 = vpack.c.b16 %v658, %v654
    %v995 = vpack.c.b16 %v659, %v655
    %v996 = vpack.c.b16 %v660, %v656
    %v997 = vpack.c.b16 %v665, %v661
    %v998 = vpack.c.b16 %v666, %v662
    %v999 = vpack.c.b16 %v667, %v663
    %v1000 = vpack.c.b16 %v668, %v664
    %v1001 = vpack.c.b16 %v673, %v669
    %v1002 = vpack.c.b16 %v674, %v670
    %v1003 = vpack.c.b16 %v675, %v671
    %v1004 = vpack.c.b16 %v676, %v672
    %v1005 = vpack.c.b16 %v681, %v677
    %v1006 = vpack.c.b16 %v682, %v678
    %v1007 = vpack.c.b16 %v683, %v679
    %v1008 = vpack.c.b16 %v684, %v680
    %v1009 = vpack.c.b16 %v689, %v685
    %v1010 = vpack.c.b16 %v690, %v686
    %v1011 = vpack.c.b16 %v691, %v687
    %v1012 = vpack.c.b16 %v692, %v688
    %v1013 = vpack.c.b16 %v697, %v693
    %v1014 = vpack.c.b16 %v698, %v694
    %v1015 = vpack.c.b16 %v699, %v695
    %v1016 = vpack.c.b16 %v700, %v696
    %v1017 = vpack.c.b16 %v705, %v701
    %v1018 = vpack.c.b16 %v706, %v702
    %v1019 = vpack.c.b16 %v707, %v703
    %v1020 = vpack.c.b16 %v708, %v704
    %v1021 = vpack.c.b16 %v713, %v709
    %v1022 = vpack.c.b16 %v714, %v710
    %v1023 = vpack.c.b16 %v715, %v711
    %v1024 = vpack.c.b16 %v716, %v712
    %v1025 = vpack.c.b16 %v721, %v717
    %v1026 = vpack.c.b16 %v722, %v718
    %v1027 = vpack.c.b16 %v723, %v719
    %v1028 = vpack.c.b16 %v724, %v720
    %v1029 = vpack.c.b16 %v729, %v725
    %v1030 = vpack.c.b16 %v730, %v726
    %v1031 = vpack.c.b16 %v731, %v727
    %v1032 = vpack.c.b16 %v732, %v728
    %v1033 = vpack.c.b16 %v737, %v733
    %v1034 = vpack.c.b16 %v738, %v734
    %v1035 = vpack.c.b16 %v739, %v735
    %v1036 = vpack.c.b16 %v740, %v736
    %v1037 = vpack.c.b16 %v745, %v741
    %v1038 = vpack.c.b16 %v746, %v742
    %v1039 = vpack.c.b16 %v747, %v743
    %v1040 = vpack.c.b16 %v748, %v744
    %v1041 = vpack.c.b16 %v753, %v749
    %v1042 = vpack.c.b16 %v754, %v750
    %v1043 = vpack.c.b16 %v755, %v751
    %v1044 = vpack.c.b16 %v756, %v752
    %v1045 = vpack.c.b16 %v761, %v757
    %v1046 = vpack.c.b16 %v762, %v758
    %v1047 = vpack.c.b16 %v763, %v759
    %v1048 = vpack.c.b16 %v764, %v760
    %v1049 = vpack.c.b16 %v769, %v765
    %v1050 = vpack.c.b16 %v770, %v766
    %v1051 = vpack.c.b16 %v771, %v767
    %v1052 = vpack.c.b16 %v772, %v768
    %v1053 = vpack.c.b16 %v777, %v773
    %v1054 = vpack.c.b16 %v778, %v774
    %v1055 = vpack.c.b16 %v779, %v775
    %v1056 = vpack.c.b16 %v780, %v776
    %v1057 = vpack.c.b16 %v785, %v781
    %v1058 = vpack.c.b16 %v786, %v782
    %v1059 = vpack.c.b16 %v787, %v783
    %v1060 = vpack.c.b16 %v788, %v784
    %v1061 = vpack.c.b16 %v793, %v789
    %v1062 = vpack.c.b16 %v794, %v790
    %v1063 = vpack.c.b16 %v795, %v791
    %v1064 = vpack.c.b16 %v796, %v792
    %v1065 = vpack.c.b16 %v801, %v797
    %v1066 = vpack.c.b16 %v802, %v798
    %v1067 = vpack.c.b16 %v803, %v799
    %v1068 = vpack.c.b16 %v804, %v800
    %v1069 = vpack.c.b16 %v809, %v805
    %v1070 = vpack.c.b16 %v810, %v806
    %v1071 = vpack.c.b16 %v811, %v807
    %v1072 = vpack.c.b16 %v812, %v808
    %v1073 = vpack.c.b16 %v817, %v813
    %v1074 = vpack.c.b16 %v818, %v814
    %v1075 = vpack.c.b16 %v819, %v815
    %v1076 = vpack.c.b16 %v820, %v816
    %v1077 = vpack.c.b16 %v825, %v821
    %v1078 = vpack.c.b16 %v826, %v822
    %v1079 = vpack.c.b16 %v827, %v823
    %v1080 = vpack.c.b16 %v828, %v824
    %v1081 = vpack.c.b16 %v833, %v829
    %v1082 = vpack.c.b16 %v834, %v830
    %v1083 = vpack.c.b16 %v835, %v831
    %v1084 = vpack.c.b16 %v836, %v832
    %v1085 = vpack.c.b16 %v841, %v837
    %v1086 = vpack.c.b16 %v842, %v838
    %v1087 = vpack.c.b16 %v843, %v839
    %v1088 = vpack.c.b16 %v844, %v840
    %v1089 = vpack.c.b16 %v849, %v845
    %v1090 = vpack.c.b16 %v850, %v846
    %v1091 = vpack.c.b16 %v851, %v847
    %v1092 = vpack.c.b16 %v852, %v848
    %v1093 = vpack.c.b16 %v857, %v853
    %v1094 = vpack.c.b16 %v858, %v854
    %v1095 = vpack.c.b16 %v859, %v855
    %v1096 = vpack.c.b16 %v860, %v856
    %v1097 = vpack.c.b16 %v865, %v861
    %v1098 = vpack.c.b16 %v866, %v862
    %v1099 = vpack.c.b16 %v867, %v863
    %v1100 = vpack.c.b16 %v868, %v864
    %v1101 = vpack.c.b16 %v873, %v869
    %v1102 = vpack.c.b16 %v874, %v870
    %v1103 = vpack.c.b16 %v875, %v871
    %v1104 = vpack.c.b16 %v876, %v872
    %v1105 = vpack.c.b16 %v881, %v877
    %v1106 = vpack.c.b16 %v882, %v878
    %v1107 = vpack.c.b16 %v883, %v879
    %v1108 = vpack.c.b16 %v884, %v880
    %v1109 = vpack.c.b16 %v889, %v885
    %v1110 = vpack.c.b16 %v890, %v886
    %v1111 = vpack.c.b16 %v891, %v887
    %v1112 = vpack.c.b16 %v892, %v888
    %v1113 = vpack.c.b16 %v897, %v893
    %v1114 = vpack.c.b16 %v898, %v894
    %v1115 = vpack.c.b16 %v899, %v895
    %v1116 = vpack.c.b16 %v900, %v896
    %v1117 = vpack.c.b16 %v905, %v901
    %v1118 = vpack.c.b16 %v906, %v902
    %v1119 = vpack.c.b16 %v907, %v903
    %v1120 = vpack.c.b16 %v908, %v904
    %v1121 = vpack.c.b16 %v913, %v909
    %v1122 = vpack.c.b16 %v914, %v910
    %v1123 = vpack.c.b16 %v915, %v911
    %v1124 = vpack.c.b16 %v916, %v912
    %v1125 = vpack.c.b16 %v921, %v917
    %v1126 = vpack.c.b16 %v922, %v918
    %v1127 = vpack.c.b16 %v923, %v919
    %v1128 = vpack.c.b16 %v924, %v920
    %v1129 = vpack.c.b16 %v929, %v925
    %v1130 = vpack.c.b16 %v930, %v926
    %v1131 = vpack.c.b16 %v931, %v927
    %v1132 = vpack.c.b16 %v932, %v928
    %v1133 = vpack.c.b16 %v937, %v933
    %v1134 = vpack.c.b16 %v938, %v934
    %v1135 = vpack.c.b16 %v939, %v935
    %v1136 = vpack.c.b16 %v940, %v936
    %vm1333 = vcmask 130048
    %v1335 = vsel %vm1333, %v134, 0
    %1337 = vmatprep.subr.bf16.mxu0 %v970
    %1338 = vmatpush1.bf16.msra.mxu0 %v969
    %1339 = vmatprep.subr.bf16.mxu0 %v966
    %1340 = vmatpush1.bf16.msra.mxu0 %v965
    %1341 = vmatprep.subr.bf16.mxu0 %v962
    %1342 = vmatpush1.bf16.msra.mxu0 %v961
    %1343 = vmatprep.subr.bf16.mxu0 %v958
    %1344 = vmatpush1.bf16.msra.mxu0 %v957
    %1345 = vmatprep.subr.bf16.mxu0 %v954
    %1346 = vmatpush1.bf16.msra.mxu0 %v953
    %1347 = vmatprep.subr.bf16.mxu0 %v950
    %1348 = vmatpush1.bf16.msra.mxu0 %v949
    %1349 = vmatprep.subr.bf16.mxu0 %v946
    %1350 = vmatpush1.bf16.msra.mxu0 %v945
    %1351 = vmatprep.subr.bf16.mxu0 %v942
    %1352 = vmatpush1.bf16.msra.mxu0 %v941
    %1353 = vmatprep.subr.bf16.mxu0 %v1002
    %1354 = vmatpush2.bf16.msra.mxu0 %v1001
    %1355 = vmatprep.subr.bf16.mxu0 %v998
    %1356 = vmatpush2.bf16.msra.mxu0 %v997
    %1357 = vmatprep.subr.bf16.mxu0 %v994
    %1358 = vmatpush2.bf16.msra.mxu0 %v993
    %1359 = vmatprep.subr.bf16.mxu0 %v990
    %1360 = vmatpush2.bf16.msra.mxu0 %v989
    %1361 = vmatprep.subr.bf16.mxu0 %v986
    %1362 = vmatpush2.bf16.msra.mxu0 %v985
    %1363 = vmatprep.subr.bf16.mxu0 %v982
    %1364 = vmatpush2.bf16.msra.mxu0 %v981
    %1365 = vmatprep.subr.bf16.mxu0 %v978
    %1366 = vmatpush2.bf16.msra.mxu0 %v977
    %1367 = vmatprep.subr.bf16.mxu0 %v974
    %1368 = vmatpush2.bf16.msra.mxu0 %v973
    %1369 = vmatprep.mubr.bf16.mxu0 %v129
    %1370 = vmatmul.mubr.bf16.gmra.mxu0 %v128
    %v1371 = vpop.f32.mrf.mxu0
    %v1372 = vadd.f32 %v336, %v1371
    %v1373 = vpop.f32.mrf.mxu0
    %v1374 = vadd.f32 %v340, %v1373
    %v1375 = vpop.f32.mrf.mxu0
    %v1376 = vadd.f32 %v336, %v1375
    %v1377 = vpop.f32.mrf.mxu0
    %v1378 = vadd.f32 %v340, %v1377
    %1379 = vdwg.mxu0
    %1380 = vmatprep.subr.bf16.mxu0 %v1034
    %1381 = vmatpush1.bf16.msra.mxu0 %v1033
    %1382 = vmatprep.subr.bf16.mxu0 %v1030
    %1383 = vmatpush1.bf16.msra.mxu0 %v1029
    %1384 = vmatprep.subr.bf16.mxu0 %v1026
    %1385 = vmatpush1.bf16.msra.mxu0 %v1025
    %1386 = vmatprep.subr.bf16.mxu0 %v1022
    %1387 = vmatpush1.bf16.msra.mxu0 %v1021
    %1388 = vmatprep.subr.bf16.mxu0 %v1018
    %1389 = vmatpush1.bf16.msra.mxu0 %v1017
    %1390 = vmatprep.subr.bf16.mxu0 %v1014
    %1391 = vmatpush1.bf16.msra.mxu0 %v1013
    %1392 = vmatprep.subr.bf16.mxu0 %v1010
    %1393 = vmatpush1.bf16.msra.mxu0 %v1009
    %1394 = vmatprep.subr.bf16.mxu0 %v1006
    %1395 = vmatpush1.bf16.msra.mxu0 %v1005
    %1396 = vmatprep.subr.bf16.mxu0 %v1066
    %1397 = vmatpush2.bf16.msra.mxu0 %v1065
    %1398 = vmatprep.subr.bf16.mxu0 %v1062
    %1399 = vmatpush2.bf16.msra.mxu0 %v1061
    %1400 = vmatprep.subr.bf16.mxu0 %v1058
    %1401 = vmatpush2.bf16.msra.mxu0 %v1057
    %1402 = vmatprep.subr.bf16.mxu0 %v1054
    %1403 = vmatpush2.bf16.msra.mxu0 %v1053
    %1404 = vmatprep.subr.bf16.mxu0 %v1050
    %1405 = vmatpush2.bf16.msra.mxu0 %v1049
    %1406 = vmatprep.subr.bf16.mxu0 %v1046
    %1407 = vmatpush2.bf16.msra.mxu0 %v1045
    %1408 = vmatprep.subr.bf16.mxu0 %v1042
    %1409 = vmatpush2.bf16.msra.mxu0 %v1041
    %1410 = vmatprep.subr.bf16.mxu0 %v1038
    %1411 = vmatpush2.bf16.msra.mxu0 %v1037
    %1412 = vmatprep.mubr.bf16.mxu0 %v131
    %1413 = vmatmul.mubr.bf16.gmra.mxu0 %v130
    %v1414 = vpop.f32.mrf.mxu0
    %v1415 = vadd.f32 %v1372, %v1414
    %v1416 = vpop.f32.mrf.mxu0
    %v1417 = vadd.f32 %v1374, %v1416
    %v1418 = vpop.f32.mrf.mxu0
    %v1419 = vadd.f32 %v1376, %v1418
    %v1420 = vpop.f32.mrf.mxu0
    %v1421 = vadd.f32 %v1378, %v1420
    %1422 = vdwg.mxu0
    %1423 = vmatprep.subr.bf16.mxu0 %v1098
    %1424 = vmatpush1.bf16.msra.mxu0 %v1097
    %1425 = vmatprep.subr.bf16.mxu0 %v1094
    %1426 = vmatpush1.bf16.msra.mxu0 %v1093
    %1427 = vmatprep.subr.bf16.mxu0 %v1090
    %1428 = vmatpush1.bf16.msra.mxu0 %v1089
    %1429 = vmatprep.subr.bf16.mxu0 %v1086
    %1430 = vmatpush1.bf16.msra.mxu0 %v1085
    %1431 = vmatprep.subr.bf16.mxu0 %v1082
    %1432 = vmatpush1.bf16.msra.mxu0 %v1081
    %1433 = vmatprep.subr.bf16.mxu0 %v1078
    %1434 = vmatpush1.bf16.msra.mxu0 %v1077
    %1435 = vmatprep.subr.bf16.mxu0 %v1074
    %1436 = vmatpush1.bf16.msra.mxu0 %v1073
    %1437 = vmatprep.subr.bf16.mxu0 %v1070
    %1438 = vmatpush1.bf16.msra.mxu0 %v1069
    %1439 = vmatprep.subr.bf16.mxu0 %v1130
    %1440 = vmatpush2.bf16.msra.mxu0 %v1129
    %1441 = vmatprep.subr.bf16.mxu0 %v1126
    %1442 = vmatpush2.bf16.msra.mxu0 %v1125
    %1443 = vmatprep.subr.bf16.mxu0 %v1122
    %1444 = vmatpush2.bf16.msra.mxu0 %v1121
    %1445 = vmatprep.subr.bf16.mxu0 %v1118
    %1446 = vmatpush2.bf16.msra.mxu0 %v1117
    %1447 = vmatprep.subr.bf16.mxu0 %v1114
    %1448 = vmatpush2.bf16.msra.mxu0 %v1113
    %1449 = vmatprep.subr.bf16.mxu0 %v1110
    %1450 = vmatpush2.bf16.msra.mxu0 %v1109
    %1451 = vmatprep.subr.bf16.mxu0 %v1106
    %1452 = vmatpush2.bf16.msra.mxu0 %v1105
    %1453 = vmatprep.subr.bf16.mxu0 %v1102
    %1454 = vmatpush2.bf16.msra.mxu0 %v1101
    %1455 = vmatprep.mubr.bf16.mxu0 %v133
    %1456 = vmatmul.mubr.bf16.gmra.mxu0 %v132
    %v1457 = vpop.f32.mrf.mxu0
    %v1458 = vadd.f32 %v1415, %v1457
    %v1459 = vpop.f32.mrf.mxu0
    %v1460 = vadd.f32 %v1417, %v1459
    %v1461 = vpop.f32.mrf.mxu0
    %v1462 = vadd.f32 %v1419, %v1461
    %v1463 = vpop.f32.mrf.mxu0
    %v1464 = vadd.f32 %v1421, %v1463
    %1465 = vdwg.mxu0
    %1466 = vmatprep.subr.bf16.mxu0 0
    %1467 = vmatpush1.bf16.msra.mxu0 0
    %1468 = vmatprep.subr.bf16.mxu0 0
    %1469 = vmatpush1.bf16.msra.mxu0 0
    %1470 = vmatprep.subr.bf16.mxu0 0
    %1471 = vmatpush1.bf16.msra.mxu0 0
    %1472 = vmatprep.subr.bf16.mxu0 0
    %1473 = vmatpush1.bf16.msra.mxu0 0
    %1474 = vmatprep.subr.bf16.mxu0 0
    %1475 = vmatpush1.bf16.msra.mxu0 0
    %1476 = vmatprep.subr.bf16.mxu0 0
    %1477 = vmatpush1.bf16.msra.mxu0 0
    %1478 = vmatprep.subr.bf16.mxu0 0
    %1479 = vmatpush1.bf16.msra.mxu0 0
    %1480 = vmatprep.subr.bf16.mxu0 %v1134
    %1481 = vmatpush1.bf16.msra.mxu0 %v1133
    %1482 = vmatprep.subr.bf16.mxu0 0
    %1483 = vmatpush2.bf16.msra.mxu0 0
    %1484 = vmatprep.subr.bf16.mxu0 0
    %1485 = vmatpush2.bf16.msra.mxu0 0
    %1486 = vmatprep.subr.bf16.mxu0 0
    %1487 = vmatpush2.bf16.msra.mxu0 0
    %1488 = vmatprep.subr.bf16.mxu0 0
    %1489 = vmatpush2.bf16.msra.mxu0 0
    %1490 = vmatprep.subr.bf16.mxu0 0
    %1491 = vmatpush2.bf16.msra.mxu0 0
    %1492 = vmatprep.subr.bf16.mxu0 0
    %1493 = vmatpush2.bf16.msra.mxu0 0
    %1494 = vmatprep.subr.bf16.mxu0 0
    %1495 = vmatpush2.bf16.msra.mxu0 0
    %1496 = vmatprep.subr.bf16.mxu0 0
    %1497 = vmatpush2.bf16.msra.mxu0 0
    %1498 = vmatprep.mubr.bf16.mxu0 0
    %1499 = vmatmul.mubr.bf16.gmra.mxu0 %v1335
    %v1500 = vpop.f32.mrf.mxu0
    %v1501 = vadd.f32 %v1458, %v1500
    %v1502 = vpop.f32.mrf.mxu0
    %v1503 = vadd.f32 %v1460, %v1502
    %v1504 = vpop.f32.mrf.mxu0
    %v1505 = vadd.f32 %v1462, %v1504
    %v1506 = vpop.f32.mrf.mxu0
    %v1507 = vadd.f32 %v1464, %v1506
    %1508 = vdwg.mxu0
    %1509 = vmatprep.subr.bf16.mxu0 %v972
    %1510 = vmatpush1.bf16.msra.mxu0 %v971
    %1511 = vmatprep.subr.bf16.mxu0 %v968
    %1512 = vmatpush1.bf16.msra.mxu0 %v967
    %1513 = vmatprep.subr.bf16.mxu0 %v964
    %1514 = vmatpush1.bf16.msra.mxu0 %v963
    %1515 = vmatprep.subr.bf16.mxu0 %v960
    %1516 = vmatpush1.bf16.msra.mxu0 %v959
    %1517 = vmatprep.subr.bf16.mxu0 %v956
    %1518 = vmatpush1.bf16.msra.mxu0 %v955
    %1519 = vmatprep.subr.bf16.mxu0 %v952
    %1520 = vmatpush1.bf16.msra.mxu0 %v951
    %1521 = vmatprep.subr.bf16.mxu0 %v948
    %1522 = vmatpush1.bf16.msra.mxu0 %v947
    %1523 = vmatprep.subr.bf16.mxu0 %v944
    %1524 = vmatpush1.bf16.msra.mxu0 %v943
    %1525 = vmatprep.subr.bf16.mxu0 %v1004
    %1526 = vmatpush2.bf16.msra.mxu0 %v1003
    %1527 = vmatprep.subr.bf16.mxu0 %v1000
    %1528 = vmatpush2.bf16.msra.mxu0 %v999
    %1529 = vmatprep.subr.bf16.mxu0 %v996
    %1530 = vmatpush2.bf16.msra.mxu0 %v995
    %1531 = vmatprep.subr.bf16.mxu0 %v992
    %1532 = vmatpush2.bf16.msra.mxu0 %v991
    %1533 = vmatprep.subr.bf16.mxu0 %v988
    %1534 = vmatpush2.bf16.msra.mxu0 %v987
    %1535 = vmatprep.subr.bf16.mxu0 %v984
    %1536 = vmatpush2.bf16.msra.mxu0 %v983
    %1537 = vmatprep.subr.bf16.mxu0 %v980
    %1538 = vmatpush2.bf16.msra.mxu0 %v979
    %1539 = vmatprep.subr.bf16.mxu0 %v976
    %1540 = vmatpush2.bf16.msra.mxu0 %v975
    %1541 = vmatprep.mubr.bf16.mxu0 %v129
    %1542 = vmatmul.mubr.bf16.gmra.mxu0 %v128
    %v1543 = vpop.f32.mrf.mxu0
    %v1544 = vadd.f32 %v344, %v1543
    %v1545 = vpop.f32.mrf.mxu0
    %v1546 = vadd.f32 %v348, %v1545
    %v1547 = vpop.f32.mrf.mxu0
    %v1548 = vadd.f32 %v344, %v1547
    %v1549 = vpop.f32.mrf.mxu0
    %v1550 = vadd.f32 %v348, %v1549
    %1551 = vdwg.mxu0
    %1552 = vmatprep.subr.bf16.mxu0 %v1036
    %1553 = vmatpush1.bf16.msra.mxu0 %v1035
    %1554 = vmatprep.subr.bf16.mxu0 %v1032
    %1555 = vmatpush1.bf16.msra.mxu0 %v1031
    %1556 = vmatprep.subr.bf16.mxu0 %v1028
    %1557 = vmatpush1.bf16.msra.mxu0 %v1027
    %1558 = vmatprep.subr.bf16.mxu0 %v1024
    %1559 = vmatpush1.bf16.msra.mxu0 %v1023
    %1560 = vmatprep.subr.bf16.mxu0 %v1020
    %1561 = vmatpush1.bf16.msra.mxu0 %v1019
    %1562 = vmatprep.subr.bf16.mxu0 %v1016
    %1563 = vmatpush1.bf16.msra.mxu0 %v1015
    %1564 = vmatprep.subr.bf16.mxu0 %v1012
    %1565 = vmatpush1.bf16.msra.mxu0 %v1011
    %1566 = vmatprep.subr.bf16.mxu0 %v1008
    %1567 = vmatpush1.bf16.msra.mxu0 %v1007
    %1568 = vmatprep.subr.bf16.mxu0 %v1068
    %1569 = vmatpush2.bf16.msra.mxu0 %v1067
    %1570 = vmatprep.subr.bf16.mxu0 %v1064
    %1571 = vmatpush2.bf16.msra.mxu0 %v1063
    %1572 = vmatprep.subr.bf16.mxu0 %v1060
    %1573 = vmatpush2.bf16.msra.mxu0 %v1059
    %1574 = vmatprep.subr.bf16.mxu0 %v1056
    %1575 = vmatpush2.bf16.msra.mxu0 %v1055
    %1576 = vmatprep.subr.bf16.mxu0 %v1052
    %1577 = vmatpush2.bf16.msra.mxu0 %v1051
    %1578 = vmatprep.subr.bf16.mxu0 %v1048
    %1579 = vmatpush2.bf16.msra.mxu0 %v1047
    %1580 = vmatprep.subr.bf16.mxu0 %v1044
    %1581 = vmatpush2.bf16.msra.mxu0 %v1043
    %1582 = vmatprep.subr.bf16.mxu0 %v1040
    %1583 = vmatpush2.bf16.msra.mxu0 %v1039
    %1584 = vmatprep.mubr.bf16.mxu0 %v131
    %1585 = vmatmul.mubr.bf16.gmra.mxu0 %v130
    %v1586 = vpop.f32.mrf.mxu0
    %v1587 = vadd.f32 %v1544, %v1586
    %v1588 = vpop.f32.mrf.mxu0
    %v1589 = vadd.f32 %v1546, %v1588
    %v1590 = vpop.f32.mrf.mxu0
    %v1591 = vadd.f32 %v1548, %v1590
    %v1592 = vpop.f32.mrf.mxu0
    %v1593 = vadd.f32 %v1550, %v1592
    %1594 = vdwg.mxu0
    %1595 = vmatprep.subr.bf16.mxu0 %v1100
    %1596 = vmatpush1.bf16.msra.mxu0 %v1099
    %1597 = vmatprep.subr.bf16.mxu0 %v1096
    %1598 = vmatpush1.bf16.msra.mxu0 %v1095
    %1599 = vmatprep.subr.bf16.mxu0 %v1092
    %1600 = vmatpush1.bf16.msra.mxu0 %v1091
    %1601 = vmatprep.subr.bf16.mxu0 %v1088
    %1602 = vmatpush1.bf16.msra.mxu0 %v1087
    %1603 = vmatprep.subr.bf16.mxu0 %v1084
    %1604 = vmatpush1.bf16.msra.mxu0 %v1083
    %1605 = vmatprep.subr.bf16.mxu0 %v1080
    %1606 = vmatpush1.bf16.msra.mxu0 %v1079
    %1607 = vmatprep.subr.bf16.mxu0 %v1076
    %1608 = vmatpush1.bf16.msra.mxu0 %v1075
    %1609 = vmatprep.subr.bf16.mxu0 %v1072
    %1610 = vmatpush1.bf16.msra.mxu0 %v1071
    %1611 = vmatprep.subr.bf16.mxu0 %v1132
    %1612 = vmatpush2.bf16.msra.mxu0 %v1131
    %1613 = vmatprep.subr.bf16.mxu0 %v1128
    %1614 = vmatpush2.bf16.msra.mxu0 %v1127
    %1615 = vmatprep.subr.bf16.mxu0 %v1124
    %1616 = vmatpush2.bf16.msra.mxu0 %v1123
    %1617 = vmatprep.subr.bf16.mxu0 %v1120
    %1618 = vmatpush2.bf16.msra.mxu0 %v1119
    %1619 = vmatprep.subr.bf16.mxu0 %v1116
    %1620 = vmatpush2.bf16.msra.mxu0 %v1115
    %1621 = vmatprep.subr.bf16.mxu0 %v1112
    %1622 = vmatpush2.bf16.msra.mxu0 %v1111
    %1623 = vmatprep.subr.bf16.mxu0 %v1108
    %1624 = vmatpush2.bf16.msra.mxu0 %v1107
    %1625 = vmatprep.subr.bf16.mxu0 %v1104
    %1626 = vmatpush2.bf16.msra.mxu0 %v1103
    %1627 = vmatprep.mubr.bf16.mxu0 %v133
    %1628 = vmatmul.mubr.bf16.gmra.mxu0 %v132
    %v1629 = vpop.f32.mrf.mxu0
    %v1630 = vadd.f32 %v1587, %v1629
    %v1631 = vpop.f32.mrf.mxu0
    %v1632 = vadd.f32 %v1589, %v1631
    %v1633 = vpop.f32.mrf.mxu0
    %v1634 = vadd.f32 %v1591, %v1633
    %v1635 = vpop.f32.mrf.mxu0
    %v1636 = vadd.f32 %v1593, %v1635
    %1637 = vdwg.mxu0
    %1638 = vmatprep.subr.bf16.mxu0 0
    %1639 = vmatpush1.bf16.msra.mxu0 0
    %1640 = vmatprep.subr.bf16.mxu0 0
    %1641 = vmatpush1.bf16.msra.mxu0 0
    %1642 = vmatprep.subr.bf16.mxu0 0
    %1643 = vmatpush1.bf16.msra.mxu0 0
    %1644 = vmatprep.subr.bf16.mxu0 0
    %1645 = vmatpush1.bf16.msra.mxu0 0
    %1646 = vmatprep.subr.bf16.mxu0 0
    %1647 = vmatpush1.bf16.msra.mxu0 0
    %1648 = vmatprep.subr.bf16.mxu0 0
    %1649 = vmatpush1.bf16.msra.mxu0 0
    %1650 = vmatprep.subr.bf16.mxu0 0
    %1651 = vmatpush1.bf16.msra.mxu0 0
    %1652 = vmatprep.subr.bf16.mxu0 %v1136
    %1653 = vmatpush1.bf16.msra.mxu0 %v1135
    %1654 = vmatprep.subr.bf16.mxu0 0
    %1655 = vmatpush2.bf16.msra.mxu0 0
    %1656 = vmatprep.subr.bf16.mxu0 0
    %1657 = vmatpush2.bf16.msra.mxu0 0
    %1658 = vmatprep.subr.bf16.mxu0 0
    %1659 = vmatpush2.bf16.msra.mxu0 0
    %1660 = vmatprep.subr.bf16.mxu0 0
    %1661 = vmatpush2.bf16.msra.mxu0 0
    %1662 = vmatprep.subr.bf16.mxu0 0
    %1663 = vmatpush2.bf16.msra.mxu0 0
    %1664 = vmatprep.subr.bf16.mxu0 0
    %1665 = vmatpush2.bf16.msra.mxu0 0
    %1666 = vmatprep.subr.bf16.mxu0 0
    %1667 = vmatpush2.bf16.msra.mxu0 0
    %1668 = vmatprep.subr.bf16.mxu0 0
    %1669 = vmatpush2.bf16.msra.mxu0 0
    %1670 = vmatprep.mubr.bf16.mxu0 0
    %1671 = vmatmul.mubr.bf16.gmra.mxu0 %v1335
    %v1672 = vpop.f32.mrf.mxu0
    %v1673 = vadd.f32 %v1630, %v1672
    %v1674 = vpop.f32.mrf.mxu0
    %v1675 = vadd.f32 %v1632, %v1674
    %v1676 = vpop.f32.mrf.mxu0
    %v1677 = vadd.f32 %v1634, %v1676
    %v1678 = vpop.f32.mrf.mxu0
    %v1679 = vadd.f32 %v1636, %v1678
    %1680 = vdwg.mxu0
    %v1681 = vmax.f32 %v1501, 0.0
    %v1682 = vmax.f32 %v1503, 0.0
    %v1683 = vmax.f32 %v1673, 0.0
    %v1684 = vmax.f32 %v1675, 0.0
    %v1685 = vmax.f32 %v1505, 0.0
    %v1686 = vmax.f32 %v1507, 0.0
    %v1687 = vmax.f32 %v1677, 0.0
    %v1688 = vmax.f32 %v1679, 0.0
    %v1689 = vpack.c.bf16 %v1685, %v1681
    %v1690 = vpack.c.bf16 %v1686, %v1682
    %v1691 = vpack.c.bf16 %v1687, %v1683
    %v1692 = vpack.c.bf16 %v1688, %v1684
    %v1693 = vld [vmem:[#allocation8] sm:$0xff]
    %v1694 = vld [vmem:[#allocation8 + $0x8] sm:$0xff]
    %v1695 = vld [vmem:[#allocation8 + $0x10] sm:$0xff]
    %v1696 = vld [vmem:[#allocation8 + $0x18] sm:$0xff]
    %v1697 = vld [vmem:[#allocation8 + $0x20] sm:$0xff]
    %v1698 = vld [vmem:[#allocation8 + $0x28] sm:$0xff]
    %v1699 = vld [vmem:[#allocation8 + $0x30] sm:$0xff]
    %v1700 = vld [vmem:[#allocation8 + $0x38] sm:$0xff]
    %v1701 = vld [vmem:[#allocation8 + $0x40] sm:$0xff]
    %v1702 = vld [vmem:[#allocation8 + $0x48] sm:$0xff]
    %v1703 = vld [vmem:[#allocation8 + $0x50] sm:$0xff]
    %v1704 = vld [vmem:[#allocation8 + $0x58] sm:$0xff]
    %v1705 = vld [vmem:[#allocation8 + $0x60] sm:$0xff]
    %v1706 = vld [vmem:[#allocation8 + $0x68] sm:$0xff]
    %v1707 = vld [vmem:[#allocation8 + $0x70] sm:$0xff]
    %v1708 = vld [vmem:[#allocation8 + $0x78] sm:$0xff]
    %v1709 = vld [vmem:[#allocation8 + $0x80] sm:$0xff]
    %v1710 = vld [vmem:[#allocation8 + $0x88] sm:$0xff]
    %v1711 = vld [vmem:[#allocation8 + $0x90] sm:$0xff]
    %v1712 = vld [vmem:[#allocation8 + $0x98] sm:$0xff]
    %v1713 = vld [vmem:[#allocation8 + $0xa0] sm:$0xff]
    %v1714 = vld [vmem:[#allocation8 + $0xa8] sm:$0xff]
    %v1715 = vld [vmem:[#allocation8 + $0xb0] sm:$0xff]
    %v1716 = vld [vmem:[#allocation8 + $0xb8] sm:$0xff]
    %v1717 = vld [vmem:[#allocation8 + $0xc0] sm:$0xff]
    %v1718 = vld [vmem:[#allocation8 + $0xc8] sm:$0xff]
    %v1719 = vld [vmem:[#allocation8 + $0xd0] sm:$0xff]
    %v1720 = vld [vmem:[#allocation8 + $0xd8] sm:$0xff]
    %v1721 = vld [vmem:[#allocation8 + $0xe0] sm:$0xff]
    %v1722 = vld [vmem:[#allocation8 + $0xe8] sm:$0xff]
    %v1723 = vld [vmem:[#allocation8 + $0xf0] sm:$0xff]
    %v1724 = vld [vmem:[#allocation8 + $0xf8] sm:$0xff]
    %v1725 = vld [vmem:[#allocation8 + $0x100] sm:$0xff]
    %v1726 = vld [vmem:[#allocation8 + $0x108] sm:$0xff]
    %v1727 = vld [vmem:[#allocation8 + $0x110] sm:$0xff]
    %v1728 = vld [vmem:[#allocation8 + $0x118] sm:$0xff]
    %v1729 = vld [vmem:[#allocation8 + $0x120] sm:$0xff]
    %v1730 = vld [vmem:[#allocation8 + $0x128] sm:$0xff]
    %v1731 = vld [vmem:[#allocation8 + $0x130] sm:$0xff]
    %v1732 = vld [vmem:[#allocation8 + $0x138] sm:$0xff]
    %v1733 = vld [vmem:[#allocation8 + $0x140] sm:$0xff]
    %v1734 = vld [vmem:[#allocation8 + $0x148] sm:$0xff]
    %v1735 = vld [vmem:[#allocation8 + $0x150] sm:$0xff]
    %v1736 = vld [vmem:[#allocation8 + $0x158] sm:$0xff]
    %v1737 = vld [vmem:[#allocation8 + $0x160] sm:$0xff]
    %v1738 = vld [vmem:[#allocation8 + $0x168] sm:$0xff]
    %v1739 = vld [vmem:[#allocation8 + $0x170] sm:$0xff]
    %v1740 = vld [vmem:[#allocation8 + $0x178] sm:$0xff]
    %v1741 = vld [vmem:[#allocation8 + $0x180] sm:$0xff]
    %v1742 = vld [vmem:[#allocation8 + $0x188] sm:$0xff]
    %v1743 = vld [vmem:[#allocation8 + $0x190] sm:$0xff]
    %v1744 = vld [vmem:[#allocation8 + $0x198] sm:$0xff]
    %v1745 = vld [vmem:[#allocation8 + $0x1a0] sm:$0xff]
    %v1746 = vld [vmem:[#allocation8 + $0x1a8] sm:$0xff]
    %v1747 = vld [vmem:[#allocation8 + $0x1b0] sm:$0xff]
    %v1748 = vld [vmem:[#allocation8 + $0x1b8] sm:$0xff]
    %v1749 = vld [vmem:[#allocation8 + $0x1c0] sm:$0xff]
    %v1750 = vld [vmem:[#allocation8 + $0x1c8] sm:$0xff]
    %v1751 = vld [vmem:[#allocation8 + $0x1d0] sm:$0xff]
    %v1752 = vld [vmem:[#allocation8 + $0x1d8] sm:$0xff]
    %v1753 = vld [vmem:[#allocation8 + $0x1e0] sm:$0xff]
    %v1754 = vld [vmem:[#allocation8 + $0x1e8] sm:$0xff]
    %v1755 = vld [vmem:[#allocation8 + $0x1f0] sm:$0xff]
    %v1756 = vld [vmem:[#allocation8 + $0x1f8] sm:$0xff]
    %v1757 = vld [vmem:[%s4] sm:$0x3]
    %v1759 = vlaneseq
    %v1760 = vshrl.u32 %v1759, 7
    %v1761 = vsub.s32 0, %v1760
    %v1762 = vrot.slane %v1757, %v1761
    %v1763 = vlaneseq
    %v1764 = vshrl.u32 %v1763, 7
    %v1765 = vsub.s32 1, %v1764
    %v1766 = vrot.slane %v1757, %v1765
    %v1833 = vunpack.c.l.b16 %v1693
    %v1834 = vunpack.c.h.b16 %v1693
    %v1835 = vunpack.c.l.b16 %v1694
    %v1836 = vunpack.c.h.b16 %v1694
    %v1837 = vunpack.c.l.b16 %v1695
    %v1838 = vunpack.c.h.b16 %v1695
    %v1839 = vunpack.c.l.b16 %v1696
    %v1840 = vunpack.c.h.b16 %v1696
    %v1841 = vunpack.c.l.b16 %v1697
    %v1842 = vunpack.c.h.b16 %v1697
    %v1843 = vunpack.c.l.b16 %v1698
    %v1844 = vunpack.c.h.b16 %v1698
    %v1845 = vunpack.c.l.b16 %v1699
    %v1846 = vunpack.c.h.b16 %v1699
    %v1847 = vunpack.c.l.b16 %v1700
    %v1848 = vunpack.c.h.b16 %v1700
    %v1849 = vunpack.c.l.b16 %v1701
    %v1850 = vunpack.c.h.b16 %v1701
    %v1851 = vunpack.c.l.b16 %v1702
    %v1852 = vunpack.c.h.b16 %v1702
    %v1853 = vunpack.c.l.b16 %v1703
    %v1854 = vunpack.c.h.b16 %v1703
    %v1855 = vunpack.c.l.b16 %v1704
    %v1856 = vunpack.c.h.b16 %v1704
    %v1857 = vunpack.c.l.b16 %v1705
    %v1858 = vunpack.c.h.b16 %v1705
    %v1859 = vunpack.c.l.b16 %v1706
    %v1860 = vunpack.c.h.b16 %v1706
    %v1861 = vunpack.c.l.b16 %v1707
    %v1862 = vunpack.c.h.b16 %v1707
    %v1863 = vunpack.c.l.b16 %v1708
    %v1864 = vunpack.c.h.b16 %v1708
    %v1865 = vunpack.c.l.b16 %v1709
    %v1866 = vunpack.c.h.b16 %v1709
    %v1867 = vunpack.c.l.b16 %v1710
    %v1868 = vunpack.c.h.b16 %v1710
    %v1869 = vunpack.c.l.b16 %v1711
    %v1870 = vunpack.c.h.b16 %v1711
    %v1871 = vunpack.c.l.b16 %v1712
    %v1872 = vunpack.c.h.b16 %v1712
    %v1873 = vunpack.c.l.b16 %v1713
    %v1874 = vunpack.c.h.b16 %v1713
    %v1875 = vunpack.c.l.b16 %v1714
    %v1876 = vunpack.c.h.b16 %v1714
    %v1877 = vunpack.c.l.b16 %v1715
    %v1878 = vunpack.c.h.b16 %v1715
    %v1879 = vunpack.c.l.b16 %v1716
    %v1880 = vunpack.c.h.b16 %v1716
    %v1881 = vunpack.c.l.b16 %v1717
    %v1882 = vunpack.c.h.b16 %v1717
    %v1883 = vunpack.c.l.b16 %v1718
    %v1884 = vunpack.c.h.b16 %v1718
    %v1885 = vunpack.c.l.b16 %v1719
    %v1886 = vunpack.c.h.b16 %v1719
    %v1887 = vunpack.c.l.b16 %v1720
    %v1888 = vunpack.c.h.b16 %v1720
    %v1889 = vunpack.c.l.b16 %v1721
    %v1890 = vunpack.c.h.b16 %v1721
    %v1891 = vunpack.c.l.b16 %v1722
    %v1892 = vunpack.c.h.b16 %v1722
    %v1893 = vunpack.c.l.b16 %v1723
    %v1894 = vunpack.c.h.b16 %v1723
    %v1895 = vunpack.c.l.b16 %v1724
    %v1896 = vunpack.c.h.b16 %v1724
    %v1897 = vunpack.c.l.b16 %v1725
    %v1898 = vunpack.c.h.b16 %v1725
    %v1899 = vunpack.c.l.b16 %v1726
    %v1900 = vunpack.c.h.b16 %v1726
    %v1901 = vunpack.c.l.b16 %v1727
    %v1902 = vunpack.c.h.b16 %v1727
    %v1903 = vunpack.c.l.b16 %v1728
    %v1904 = vunpack.c.h.b16 %v1728
    %v1905 = vunpack.c.l.b16 %v1729
    %v1906 = vunpack.c.h.b16 %v1729
    %v1907 = vunpack.c.l.b16 %v1730
    %v1908 = vunpack.c.h.b16 %v1730
    %v1909 = vunpack.c.l.b16 %v1731
    %v1910 = vunpack.c.h.b16 %v1731
    %v1911 = vunpack.c.l.b16 %v1732
    %v1912 = vunpack.c.h.b16 %v1732
    %v1913 = vunpack.c.l.b16 %v1733
    %v1914 = vunpack.c.h.b16 %v1733
    %v1915 = vunpack.c.l.b16 %v1734
    %v1916 = vunpack.c.h.b16 %v1734
    %v1917 = vunpack.c.l.b16 %v1735
    %v1918 = vunpack.c.h.b16 %v1735
    %v1919 = vunpack.c.l.b16 %v1736
    %v1920 = vunpack.c.h.b16 %v1736
    %v1921 = vunpack.c.l.b16 %v1737
    %v1922 = vunpack.c.h.b16 %v1737
    %v1923 = vunpack.c.l.b16 %v1738
    %v1924 = vunpack.c.h.b16 %v1738
    %v1925 = vunpack.c.l.b16 %v1739
    %v1926 = vunpack.c.h.b16 %v1739
    %v1927 = vunpack.c.l.b16 %v1740
    %v1928 = vunpack.c.h.b16 %v1740
    %v1929 = vunpack.c.l.b16 %v1741
    %v1930 = vunpack.c.h.b16 %v1741
    %v1931 = vunpack.c.l.b16 %v1742
    %v1932 = vunpack.c.h.b16 %v1742
    %v1933 = vunpack.c.l.b16 %v1743
    %v1934 = vunpack.c.h.b16 %v1743
    %v1935 = vunpack.c.l.b16 %v1744
    %v1936 = vunpack.c.h.b16 %v1744
    %v1937 = vunpack.c.l.b16 %v1745
    %v1938 = vunpack.c.h.b16 %v1745
    %v1939 = vunpack.c.l.b16 %v1746
    %v1940 = vunpack.c.h.b16 %v1746
    %v1941 = vunpack.c.l.b16 %v1747
    %v1942 = vunpack.c.h.b16 %v1747
    %v1943 = vunpack.c.l.b16 %v1748
    %v1944 = vunpack.c.h.b16 %v1748
    %v1945 = vunpack.c.l.b16 %v1749
    %v1946 = vunpack.c.h.b16 %v1749
    %v1947 = vunpack.c.l.b16 %v1750
    %v1948 = vunpack.c.h.b16 %v1750
    %v1949 = vunpack.c.l.b16 %v1751
    %v1950 = vunpack.c.h.b16 %v1751
    %v1951 = vunpack.c.l.b16 %v1752
    %v1952 = vunpack.c.h.b16 %v1752
    %v1953 = vunpack.c.l.b16 %v1753
    %v1954 = vunpack.c.h.b16 %v1753
    %v1955 = vunpack.c.l.b16 %v1754
    %v1956 = vunpack.c.h.b16 %v1754
    %v1957 = vunpack.c.l.b16 %v1755
    %v1958 = vunpack.c.h.b16 %v1755
    %v1959 = vunpack.c.l.b16 %v1756
    %v1960 = vunpack.c.h.b16 %v1756
    %v1961 = vpack.c.b16 %v1835, %v1833
    %v1962 = vpack.c.b16 %v1836, %v1834
    %v1963 = vpack.c.b16 %v1839, %v1837
    %v1964 = vpack.c.b16 %v1840, %v1838
    %v1965 = vpack.c.b16 %v1843, %v1841
    %v1966 = vpack.c.b16 %v1844, %v1842
    %v1967 = vpack.c.b16 %v1847, %v1845
    %v1968 = vpack.c.b16 %v1848, %v1846
    %v1969 = vpack.c.b16 %v1851, %v1849
    %v1970 = vpack.c.b16 %v1852, %v1850
    %v1971 = vpack.c.b16 %v1855, %v1853
    %v1972 = vpack.c.b16 %v1856, %v1854
    %v1973 = vpack.c.b16 %v1859, %v1857
    %v1974 = vpack.c.b16 %v1860, %v1858
    %v1975 = vpack.c.b16 %v1863, %v1861
    %v1976 = vpack.c.b16 %v1864, %v1862
    %v1977 = vpack.c.b16 %v1867, %v1865
    %v1978 = vpack.c.b16 %v1868, %v1866
    %v1979 = vpack.c.b16 %v1871, %v1869
    %v1980 = vpack.c.b16 %v1872, %v1870
    %v1981 = vpack.c.b16 %v1875, %v1873
    %v1982 = vpack.c.b16 %v1876, %v1874
    %v1983 = vpack.c.b16 %v1879, %v1877
    %v1984 = vpack.c.b16 %v1880, %v1878
    %v1985 = vpack.c.b16 %v1883, %v1881
    %v1986 = vpack.c.b16 %v1884, %v1882
    %v1987 = vpack.c.b16 %v1887, %v1885
    %v1988 = vpack.c.b16 %v1888, %v1886
    %v1989 = vpack.c.b16 %v1891, %v1889
    %v1990 = vpack.c.b16 %v1892, %v1890
    %v1991 = vpack.c.b16 %v1895, %v1893
    %v1992 = vpack.c.b16 %v1896, %v1894
    %v1993 = vpack.c.b16 %v1899, %v1897
    %v1994 = vpack.c.b16 %v1900, %v1898
    %v1995 = vpack.c.b16 %v1903, %v1901
    %v1996 = vpack.c.b16 %v1904, %v1902
    %v1997 = vpack.c.b16 %v1907, %v1905
    %v1998 = vpack.c.b16 %v1908, %v1906
    %v1999 = vpack.c.b16 %v1911, %v1909
    %v2000 = vpack.c.b16 %v1912, %v1910
    %v2001 = vpack.c.b16 %v1915, %v1913
    %v2002 = vpack.c.b16 %v1916, %v1914
    %v2003 = vpack.c.b16 %v1919, %v1917
    %v2004 = vpack.c.b16 %v1920, %v1918
    %v2005 = vpack.c.b16 %v1923, %v1921
    %v2006 = vpack.c.b16 %v1924, %v1922
    %v2007 = vpack.c.b16 %v1927, %v1925
    %v2008 = vpack.c.b16 %v1928, %v1926
    %v2009 = vpack.c.b16 %v1931, %v1929
    %v2010 = vpack.c.b16 %v1932, %v1930
    %v2011 = vpack.c.b16 %v1935, %v1933
    %v2012 = vpack.c.b16 %v1936, %v1934
    %v2013 = vpack.c.b16 %v1939, %v1937
    %v2014 = vpack.c.b16 %v1940, %v1938
    %v2015 = vpack.c.b16 %v1943, %v1941
    %v2016 = vpack.c.b16 %v1944, %v1942
    %v2017 = vpack.c.b16 %v1947, %v1945
    %v2018 = vpack.c.b16 %v1948, %v1946
    %v2019 = vpack.c.b16 %v1951, %v1949
    %v2020 = vpack.c.b16 %v1952, %v1950
    %v2021 = vpack.c.b16 %v1955, %v1953
    %v2022 = vpack.c.b16 %v1956, %v1954
    %v2023 = vpack.c.b16 %v1959, %v1957
    %v2024 = vpack.c.b16 %v1960, %v1958
    %2089 = vmatprep.subr.bf16.mxu0 %v1976
    %2090 = vmatpush1.bf16.msra.mxu0 %v1975
    %2091 = vmatprep.subr.bf16.mxu0 %v1974
    %2092 = vmatpush1.bf16.msra.mxu0 %v1973
    %2093 = vmatprep.subr.bf16.mxu0 %v1972
    %2094 = vmatpush1.bf16.msra.mxu0 %v1971
    %2095 = vmatprep.subr.bf16.mxu0 %v1970
    %2096 = vmatpush1.bf16.msra.mxu0 %v1969
    %2097 = vmatprep.subr.bf16.mxu0 %v1968
    %2098 = vmatpush1.bf16.msra.mxu0 %v1967
    %2099 = vmatprep.subr.bf16.mxu0 %v1966
    %2100 = vmatpush1.bf16.msra.mxu0 %v1965
    %2101 = vmatprep.subr.bf16.mxu0 %v1964
    %2102 = vmatpush1.bf16.msra.mxu0 %v1963
    %2103 = vmatprep.subr.bf16.mxu0 %v1962
    %2104 = vmatpush1.bf16.msra.mxu0 %v1961
    %2105 = vmatprep.subr.bf16.mxu0 %v1992
    %2106 = vmatpush2.bf16.msra.mxu0 %v1991
    %2107 = vmatprep.subr.bf16.mxu0 %v1990
    %2108 = vmatpush2.bf16.msra.mxu0 %v1989
    %2109 = vmatprep.subr.bf16.mxu0 %v1988
    %2110 = vmatpush2.bf16.msra.mxu0 %v1987
    %2111 = vmatprep.subr.bf16.mxu0 %v1986
    %2112 = vmatpush2.bf16.msra.mxu0 %v1985
    %2113 = vmatprep.subr.bf16.mxu0 %v1984
    %2114 = vmatpush2.bf16.msra.mxu0 %v1983
    %2115 = vmatprep.subr.bf16.mxu0 %v1982
    %2116 = vmatpush2.bf16.msra.mxu0 %v1981
    %2117 = vmatprep.subr.bf16.mxu0 %v1980
    %2118 = vmatpush2.bf16.msra.mxu0 %v1979
    %2119 = vmatprep.subr.bf16.mxu0 %v1978
    %2120 = vmatpush2.bf16.msra.mxu0 %v1977
    %2121 = vmatprep.mubr.bf16.mxu0 %v1690
    %2122 = vmatmul.mubr.bf16.gmra.mxu0 %v1689
    %v2123 = vpop.f32.mrf.mxu0
    %v2124 = vadd.f32 %v1762, %v2123
    %v2125 = vpop.f32.mrf.mxu0
    %v2126 = vadd.f32 %v1766, %v2125
    %v2127 = vpop.f32.mrf.mxu0
    %v2128 = vadd.f32 %v1762, %v2127
    %v2129 = vpop.f32.mrf.mxu0
    %v2130 = vadd.f32 %v1766, %v2129
    %2131 = vdwg.mxu0
    %2132 = vmatprep.subr.bf16.mxu0 %v2008
    %2133 = vmatpush1.bf16.msra.mxu0 %v2007
    %2134 = vmatprep.subr.bf16.mxu0 %v2006
    %2135 = vmatpush1.bf16.msra.mxu0 %v2005
    %2136 = vmatprep.subr.bf16.mxu0 %v2004
    %2137 = vmatpush1.bf16.msra.mxu0 %v2003
    %2138 = vmatprep.subr.bf16.mxu0 %v2002
    %2139 = vmatpush1.bf16.msra.mxu0 %v2001
    %2140 = vmatprep.subr.bf16.mxu0 %v2000
    %2141 = vmatpush1.bf16.msra.mxu0 %v1999
    %2142 = vmatprep.subr.bf16.mxu0 %v1998
    %2143 = vmatpush1.bf16.msra.mxu0 %v1997
    %2144 = vmatprep.subr.bf16.mxu0 %v1996
    %2145 = vmatpush1.bf16.msra.mxu0 %v1995
    %2146 = vmatprep.subr.bf16.mxu0 %v1994
    %2147 = vmatpush1.bf16.msra.mxu0 %v1993
    %2148 = vmatprep.subr.bf16.mxu0 %v2024
    %2149 = vmatpush2.bf16.msra.mxu0 %v2023
    %2150 = vmatprep.subr.bf16.mxu0 %v2022
    %2151 = vmatpush2.bf16.msra.mxu0 %v2021
    %2152 = vmatprep.subr.bf16.mxu0 %v2020
    %2153 = vmatpush2.bf16.msra.mxu0 %v2019
    %2154 = vmatprep.subr.bf16.mxu0 %v2018
    %2155 = vmatpush2.bf16.msra.mxu0 %v2017
    %2156 = vmatprep.subr.bf16.mxu0 %v2016
    %2157 = vmatpush2.bf16.msra.mxu0 %v2015
    %2158 = vmatprep.subr.bf16.mxu0 %v2014
    %2159 = vmatpush2.bf16.msra.mxu0 %v2013
    %2160 = vmatprep.subr.bf16.mxu0 %v2012
    %2161 = vmatpush2.bf16.msra.mxu0 %v2011
    %2162 = vmatprep.subr.bf16.mxu0 %v2010
    %2163 = vmatpush2.bf16.msra.mxu0 %v2009
    %2164 = vmatprep.mubr.bf16.mxu0 %v1692
    %2165 = vmatmul.mubr.bf16.gmra.mxu0 %v1691
    %v2166 = vpop.f32.mrf.mxu0
    %v2167 = vadd.f32 %v2124, %v2166
    %v2168 = vpop.f32.mrf.mxu0
    %v2169 = vadd.f32 %v2126, %v2168
    %v2170 = vpop.f32.mrf.mxu0
    %v2171 = vadd.f32 %v2128, %v2170
    %v2172 = vpop.f32.mrf.mxu0
    %v2173 = vadd.f32 %v2130, %v2172
    %2174 = vdwg.mxu0
    %v2175 = vmax.f32 %v2167, 0.0
    %v2176 = vmax.f32 %v2169, 0.0
    %v2177 = vmax.f32 %v2171, 0.0
    %v2178 = vmax.f32 %v2173, 0.0
    %v2179 = vpack.c.bf16 %v2177, %v2175
    %v2180 = vpack.c.bf16 %v2178, %v2176
    %v2181 = vld [vmem:[#allocation10] sm:$0xf]
    %v2182 = vld [vmem:[#allocation10 + $0x4] sm:$0xf]
    %v2183 = vld [vmem:[#allocation10 + $0x8] sm:$0xf]
    %v2184 = vld [vmem:[#allocation10 + $0xc] sm:$0xf]
    %v2185 = vld [vmem:[#allocation10 + $0x10] sm:$0xf]
    %v2186 = vld [vmem:[#allocation10 + $0x14] sm:$0xf]
    %v2187 = vld [vmem:[#allocation10 + $0x18] sm:$0xf]
    %v2188 = vld [vmem:[#allocation10 + $0x1c] sm:$0xf]
    %v2189 = vld [vmem:[#allocation10 + $0x20] sm:$0xf]
    %v2190 = vld [vmem:[#allocation10 + $0x24] sm:$0xf]
    %v2191 = vld [vmem:[#allocation10 + $0x28] sm:$0xf]
    %v2192 = vld [vmem:[#allocation10 + $0x2c] sm:$0xf]
    %v2193 = vld [vmem:[#allocation10 + $0x30] sm:$0xf]
    %v2194 = vld [vmem:[#allocation10 + $0x34] sm:$0xf]
    %v2195 = vld [vmem:[#allocation10 + $0x38] sm:$0xf]
    %v2196 = vld [vmem:[#allocation10 + $0x3c] sm:$0xf]
    %v2197 = vld [vmem:[#allocation10 + $0x40] sm:$0xf]
    %v2198 = vld [vmem:[#allocation10 + $0x44] sm:$0xf]
    %v2199 = vld [vmem:[#allocation10 + $0x48] sm:$0xf]
    %v2200 = vld [vmem:[#allocation10 + $0x4c] sm:$0xf]
    %v2201 = vld [vmem:[#allocation10 + $0x50] sm:$0xf]
    %v2202 = vld [vmem:[#allocation10 + $0x54] sm:$0xf]
    %v2203 = vld [vmem:[#allocation10 + $0x58] sm:$0xf]
    %v2204 = vld [vmem:[#allocation10 + $0x5c] sm:$0xf]
    %v2205 = vld [vmem:[#allocation10 + $0x60] sm:$0xf]
    %v2206 = vld [vmem:[#allocation10 + $0x64] sm:$0xf]
    %v2207 = vld [vmem:[#allocation10 + $0x68] sm:$0xf]
    %v2208 = vld [vmem:[#allocation10 + $0x6c] sm:$0xf]
    %v2209 = vld [vmem:[#allocation10 + $0x70] sm:$0xf]
    %v2210 = vld [vmem:[#allocation10 + $0x74] sm:$0xf]
    %v2211 = vld [vmem:[#allocation10 + $0x78] sm:$0xf]
    %v2212 = vld [vmem:[#allocation10 + $0x7c] sm:$0xf]
    %v2213 = vld [vmem:[%s6] sm:$0x1]
    %v2215 = vlaneseq
    %v2216 = vshrl.u32 %v2215, 7
    %v2217 = vsub.s32 0, %v2216
    %v2218 = vrot.slane %v2213, %v2217
    %v2252 = vunpack.c.l.b16 %v2181
    %v2253 = vunpack.c.l.b16 %v2182
    %v2254 = vunpack.c.l.b16 %v2183
    %v2255 = vunpack.c.l.b16 %v2184
    %v2256 = vunpack.c.l.b16 %v2185
    %v2257 = vunpack.c.l.b16 %v2186
    %v2258 = vunpack.c.l.b16 %v2187
    %v2259 = vunpack.c.l.b16 %v2188
    %v2260 = vunpack.c.l.b16 %v2189
    %v2261 = vunpack.c.l.b16 %v2190
    %v2262 = vunpack.c.l.b16 %v2191
    %v2263 = vunpack.c.l.b16 %v2192
    %v2264 = vunpack.c.l.b16 %v2193
    %v2265 = vunpack.c.l.b16 %v2194
    %v2266 = vunpack.c.l.b16 %v2195
    %v2267 = vunpack.c.l.b16 %v2196
    %v2268 = vunpack.c.l.b16 %v2197
    %v2269 = vunpack.c.l.b16 %v2198
    %v2270 = vunpack.c.l.b16 %v2199
    %v2271 = vunpack.c.l.b16 %v2200
    %v2272 = vunpack.c.l.b16 %v2201
    %v2273 = vunpack.c.l.b16 %v2202
    %v2274 = vunpack.c.l.b16 %v2203
    %v2275 = vunpack.c.l.b16 %v2204
    %v2276 = vunpack.c.l.b16 %v2205
    %v2277 = vunpack.c.l.b16 %v2206
    %v2278 = vunpack.c.l.b16 %v2207
    %v2279 = vunpack.c.l.b16 %v2208
    %v2280 = vunpack.c.l.b16 %v2209
    %v2281 = vunpack.c.l.b16 %v2210
    %v2282 = vunpack.c.l.b16 %v2211
    %v2283 = vunpack.c.l.b16 %v2212
    %v2284 = vpack.c.b16 %v2253, %v2252
    %v2285 = vpack.c.b16 %v2255, %v2254
    %v2286 = vpack.c.b16 %v2257, %v2256
    %v2287 = vpack.c.b16 %v2259, %v2258
    %v2288 = vpack.c.b16 %v2261, %v2260
    %v2289 = vpack.c.b16 %v2263, %v2262
    %v2290 = vpack.c.b16 %v2265, %v2264
    %v2291 = vpack.c.b16 %v2267, %v2266
    %v2292 = vpack.c.b16 %v2269, %v2268
    %v2293 = vpack.c.b16 %v2271, %v2270
    %v2294 = vpack.c.b16 %v2273, %v2272
    %v2295 = vpack.c.b16 %v2275, %v2274
    %v2296 = vpack.c.b16 %v2277, %v2276
    %v2297 = vpack.c.b16 %v2279, %v2278
    %v2298 = vpack.c.b16 %v2281, %v2280
    %v2299 = vpack.c.b16 %v2283, %v2282
    %2316 = vmatprep.subr.bf16.mxu0 0
    %2317 = vmatpush1.bf16.msra.mxu0 %v2291
    %2318 = vmatprep.subr.bf16.mxu0 0
    %2319 = vmatpush1.bf16.msra.mxu0 %v2290
    %2320 = vmatprep.subr.bf16.mxu0 0
    %2321 = vmatpush1.bf16.msra.mxu0 %v2289
    %2322 = vmatprep.subr.bf16.mxu0 0
    %2323 = vmatpush1.bf16.msra.mxu0 %v2288
    %2324 = vmatprep.subr.bf16.mxu0 0
    %2325 = vmatpush1.bf16.msra.mxu0 %v2287
    %2326 = vmatprep.subr.bf16.mxu0 0
    %2327 = vmatpush1.bf16.msra.mxu0 %v2286
    %2328 = vmatprep.subr.bf16.mxu0 0
    %2329 = vmatpush1.bf16.msra.mxu0 %v2285
    %2330 = vmatprep.subr.bf16.mxu0 0
    %2331 = vmatpush1.bf16.msra.mxu0 %v2284
    %2332 = vmatprep.subr.bf16.mxu0 0
    %2333 = vmatpush2.bf16.msra.mxu0 %v2299
    %2334 = vmatprep.subr.bf16.mxu0 0
    %2335 = vmatpush2.bf16.msra.mxu0 %v2298
    %2336 = vmatprep.subr.bf16.mxu0 0
    %2337 = vmatpush2.bf16.msra.mxu0 %v2297
    %2338 = vmatprep.subr.bf16.mxu0 0
    %2339 = vmatpush2.bf16.msra.mxu0 %v2296
    %2340 = vmatprep.subr.bf16.mxu0 0
    %2341 = vmatpush2.bf16.msra.mxu0 %v2295
    %2342 = vmatprep.subr.bf16.mxu0 0
    %2343 = vmatpush2.bf16.msra.mxu0 %v2294
    %2344 = vmatprep.subr.bf16.mxu0 0
    %2345 = vmatpush2.bf16.msra.mxu0 %v2293
    %2346 = vmatprep.subr.bf16.mxu0 0
    %2347 = vmatpush2.bf16.msra.mxu0 %v2292
    %2348 = vmatprep.mubr.bf16.mxu0 %v2180
    %2349 = vmatmul.mubr.bf16.gmra.mxu0 %v2179
    %v2350 = vpop.f32.mrf.mxu0
    %v2351 = vadd.f32 %v2218, %v2350
    %v2352 = vpop.f32.mrf.mxu0
    %v2353 = vpop.f32.mrf.mxu0
    %v2354 = vadd.f32 %v2218, %v2353
    %v2355 = vpop.f32.mrf.mxu0
    %2356 = vdwg.mxu0
    %v2357 = vmax.f32 %v2351, 0.0
    %v2358 = vmax.f32 %v2354, 0.0
    %v2359 = vpack.c.bf16 %v2358, %v2357
    %v2360 = vld [vmem:[#allocation11] sm:$0xf]
    %v2361 = vld [vmem:[#allocation11 + $0x4] sm:$0xf]
    %v2362 = vld [vmem:[#allocation11 + $0x8] sm:$0xf]
    %v2363 = vld [vmem:[#allocation11 + $0xc] sm:$0xf]
    %v2364 = vld [vmem:[#allocation11 + $0x10] sm:$0xf]
    %v2365 = vld [vmem:[#allocation11 + $0x14] sm:$0xf]
    %v2366 = vld [vmem:[#allocation11 + $0x18] sm:$0xf]
    %v2367 = vld [vmem:[#allocation11 + $0x1c] sm:$0xf]
    %v2368 = vld [vmem:[#allocation11 + $0x20] sm:$0xf]
    %v2369 = vld [vmem:[#allocation11 + $0x24] sm:$0xf]
    %v2370 = vld [vmem:[#allocation11 + $0x28] sm:$0xf]
    %v2371 = vld [vmem:[#allocation11 + $0x2c] sm:$0xf]
    %v2372 = vld [vmem:[#allocation11 + $0x30] sm:$0xf]
    %v2373 = vld [vmem:[#allocation11 + $0x34] sm:$0xf]
    %v2374 = vld [vmem:[#allocation11 + $0x38] sm:$0xf]
    %v2375 = vld [vmem:[#allocation11 + $0x3c] sm:$0xf]
    %v2376 = vld [vmem:[%s8] sm:$0x1]
    %v2378 = vlaneseq
    %v2379 = vshrl.u32 %v2378, 7
    %v2380 = vsub.s32 0, %v2379
    %v2381 = vrot.slane %v2376, %v2380
    %v2399 = vunpack.c.l.b16 %v2360
    %v2400 = vunpack.c.l.b16 %v2361
    %v2401 = vunpack.c.l.b16 %v2362
    %v2402 = vunpack.c.l.b16 %v2363
    %v2403 = vunpack.c.l.b16 %v2364
    %v2404 = vunpack.c.l.b16 %v2365
    %v2405 = vunpack.c.l.b16 %v2366
    %v2406 = vunpack.c.l.b16 %v2367
    %v2407 = vunpack.c.l.b16 %v2368
    %v2408 = vunpack.c.l.b16 %v2369
    %v2409 = vunpack.c.l.b16 %v2370
    %v2410 = vunpack.c.l.b16 %v2371
    %v2411 = vunpack.c.l.b16 %v2372
    %v2412 = vunpack.c.l.b16 %v2373
    %v2413 = vunpack.c.l.b16 %v2374
    %v2414 = vunpack.c.l.b16 %v2375
    %v2415 = vpack.c.b16 %v2400, %v2399
    %v2416 = vpack.c.b16 %v2402, %v2401
    %v2417 = vpack.c.b16 %v2404, %v2403
    %v2418 = vpack.c.b16 %v2406, %v2405
    %v2419 = vpack.c.b16 %v2408, %v2407
    %v2420 = vpack.c.b16 %v2410, %v2409
    %v2421 = vpack.c.b16 %v2412, %v2411
    %v2422 = vpack.c.b16 %v2414, %v2413
    %2431 = vmatprep.subr.bf16.mxu0 0
    %2432 = vmatpush1.bf16.msra.mxu0 %v2422
    %2433 = vmatprep.subr.bf16.mxu0 0
    %2434 = vmatpush1.bf16.msra.mxu0 %v2421
    %2435 = vmatprep.subr.bf16.mxu0 0
    %2436 = vmatpush1.bf16.msra.mxu0 %v2420
    %2437 = vmatprep.subr.bf16.mxu0 0
    %2438 = vmatpush1.bf16.msra.mxu0 %v2419
    %2439 = vmatprep.subr.bf16.mxu0 0
    %2440 = vmatpush1.bf16.msra.mxu0 %v2418
    %2441 = vmatprep.subr.bf16.mxu0 0
    %2442 = vmatpush1.bf16.msra.mxu0 %v2417
    %2443 = vmatprep.subr.bf16.mxu0 0
    %2444 = vmatpush1.bf16.msra.mxu0 %v2416
    %2445 = vmatprep.subr.bf16.mxu0 0
    %2446 = vmatpush1.bf16.msra.mxu0 %v2415
    %2447 = vmatprep.subr.bf16.mxu0 0
    %2448 = vmatpush2.bf16.msra.mxu0 0
    %2449 = vmatprep.subr.bf16.mxu0 0
    %2450 = vmatpush2.bf16.msra.mxu0 0
    %2451 = vmatprep.subr.bf16.mxu0 0
    %2452 = vmatpush2.bf16.msra.mxu0 0
    %2453 = vmatprep.subr.bf16.mxu0 0
    %2454 = vmatpush2.bf16.msra.mxu0 0
    %2455 = vmatprep.subr.bf16.mxu0 0
    %2456 = vmatpush2.bf16.msra.mxu0 0
    %2457 = vmatprep.subr.bf16.mxu0 0
    %2458 = vmatpush2.bf16.msra.mxu0 0
    %2459 = vmatprep.subr.bf16.mxu0 0
    %2460 = vmatpush2.bf16.msra.mxu0 0
    %2461 = vmatprep.subr.bf16.mxu0 0
    %2462 = vmatpush2.bf16.msra.mxu0 0
    %2463 = vmatprep.mubr.bf16.mxu0 0
    %2464 = vmatmul.mubr.bf16.gmra.mxu0 %v2359
    %v2465 = vpop.f32.mrf.mxu0
    %v2466 = vadd.f32 %v2381, %v2465
    %v2467 = vpop.f32.mrf.mxu0
    %v2468 = vpop.f32.mrf.mxu0
    %v2469 = vadd.f32 %v2381, %v2468
    %v2470 = vpop.f32.mrf.mxu0
    %2471 = vdwg.mxu0
    %v2472 = vpack.c.bf16 %v2469, %v2466
    %v2474 = vunpack.c.l.b16 %v2472
    %v2475 = vunpack.c.h.b16 %v2472
    %v2476 = vpack.c.b16 %v2474, %v2474
    %v2477 = vpack.c.b16 %v2475, %v2475
    %2480 = vst [vmem:[#allocation13] sm:$0xf] %v2476
    %2481 = vst [vmem:[#allocation13 + $0x4] sm:$0xf] %v2477
    // Predicated region
    $region62: #{tpu_custom_call.1} parent=1 // pred_check
      _
    $region63: #{tpu_custom_call.1} parent=1 // pred_check_branch
      %2483 = sbr.rel (0) target = $region65
    $region64: #{tpu_custom_call.1} parent=1 // pred_region
      %s2485 = ssub.s32 128, 128
      %2486 = vsyncadd [#allocation4], %s2485
      %s2487 = sshll.u32 [#allocation13], 4
      %s2488 = int_to_ptr.vmem [resolvable:$true] %s2487
      %2493 = dma.vmem_to_hbm [thread:$0]  %s2488, 128, %s9, [#allocation4], 64, 64, 4
    $region65: #{tpu_custom_call.1} parent=1 // pred_fallthru
      _
    // Predicated region
    $region66: #{tpu_custom_call.1} parent=1 // pred_check
      _
    $region67: #{tpu_custom_call.1} parent=1 // pred_check_branch
      %2495 = sbr.rel (0) target = $region69
    $region68: #{tpu_custom_call.1} parent=1 // pred_region
      %2496 = dma.done [#allocation4], 128
    $region69: #{tpu_custom_call.1} parent=1 // pred_fallthru
      _
    %2497 = vsyncpa [#allocation3], 1
    %2498 = vsyncpa [#allocation6], 1
    %2499 = vsyncpa [#allocation9], 1
    %2500 = vsyncpa [#allocation12], 1
    %2501 = vsyncpa [#allocation4], 1

</llo_original>
